<compile_context>
chip_gen: v5e
topology: v5e:2x2
jax: 0.10.0
libtpu: 0.0.40
codegen_flags: <defaults>
</compile_context>

<pallas_src>
from math import log, sqrt

import jax
import jax.numpy as jnp
from jax.experimental import pallas as pl
from jax.experimental.pallas import tpu as pltpu


def _sigmoid(x):
    return 1.0 / (1.0 + jnp.exp(-x))


def _round_up(x, m):
    return ((x + m - 1) // m) * m


def _largest_divisor_leq(total, target):
    target = max(1, min(total, target))
    for c in range(target, 0, -1):
        if total % c == 0:
            return c
    return 1


def _make_snn_kernel(*, num_layers, tc, bb, d, dt, min_tau, threshold, v_rest,
                     reset_mechanism, output_mem, unroll, matmul_dtype):
    """Kernel for one (batch-block, time-chunk) grid step of the SNN."""

    def kernel(*refs):
        n_in = 1 + 3 * num_layers
        n_out = 2 if output_mem else 1
        x_ref = refs[0]                              # (tc, bb, d) matmul_dtype
        layer_refs = refs[1:n_in]                    # (w, b, tau_w) per layer
        out_s_ref = refs[n_in]                       # (tc, bb, d) f32
        out_v_ref = refs[n_in + 1] if output_mem else None
        cur_ref, spk_ref, v_ref = refs[n_in + n_out:]

        t_chunk = pl.program_id(1)

        @pl.when(t_chunk == 0)
        def _():
            # TODO(synk): LIF.init_voltage source unavailable; assume v0 = 0.
            v_ref[...] = jnp.zeros_like(v_ref)

        # Hoisted per-layer constants (once per grid step; (1, d) each).
        ws, bs, scales = [], [], []
        for l in range(num_layers):
            ws.append(layer_refs[3 * l][...])                       # (d, d)
            bs.append(layer_refs[3 * l + 1][...])                   # (1, d) f32
            tau = min_tau + _sigmoid(layer_refs[3 * l + 2][...])    # (1, d)
            scales.append(dt / tau)

        def lif_step(v, cur, scale):
            v = v + scale * ((v_rest - v) + cur)
            spk = (v > threshold).astype(jnp.float32)
            if reset_mechanism == "zero":
                v = v * (1.0 - spk) + v_rest * spk
            else:  # "subtract"
                v = v - spk * threshold
            return v, spk

        # Layer-by-layer time sweep: one big GEMM per layer over the whole
        # (tc*bb)-row chunk slab, then a pure-VPU LIF recurrence over tc steps.
        h = x_ref[...].reshape(tc * bb, d)           # layout-free merge
        for l in range(num_layers):
            is_last = (l == num_layers - 1)
            cur_ref[...] = (
                jnp.dot(h, ws[l], preferred_element_type=jnp.float32) + bs[l])
            scale = scales[l]

            def step(i, v):
                row = pl.multiple_of(i * bb, bb)
                cur = cur_ref[pl.ds(row, bb), :]
                v, spk = lif_step(v, cur, scale)
                if is_last:
                    out_s_ref[i] = spk
                    if output_mem:
                        # TODO(synk): post-reset membrane returned (some SNN
                        # libraries return the pre-reset value instead).
                        out_v_ref[i] = v
                else:
                    spk_ref[pl.ds(row, bb), :] = spk
                return v

            v_ref[l] = jax.lax.fori_loop(0, tc, step, v_ref[l], unroll=unroll)
            if not is_last:
                # TODO(synk): nn.Dropout treated as identity (inference mode).
                h = spk_ref[...].astype(matmul_dtype)

    return kernel


def snn_forward(x, params, *, dt, min_tau, v_threshold, v_rest,
                reset_mechanism="zero", output_mem=False,
                time_chunk=32, batch_block=None, matmul_dtype=jnp.bfloat16):
    """Runs the SNN forward pass.

    x:      (num_steps, batch, in_size) float32 spike train
    params: list of (w, b, tau_w) per Linear+LIF layer; w is [fan_in, fan_out]
            (transposed vs. torch), b and tau_w are [1, fan_out].
    Returns out_s (num_steps, batch, out_size), or (out_s, [], out_v) if
    output_mem (mirroring the PyTorch module).
    """
    num_steps, batch, in_size = x.shape
    num_layers = len(params)
    out_size = params[-1][0].shape[1]

    # ---- Lane-dense padding: uniform feature width (mult of 128), batch to 16.
    dims = [in_size] + [w.shape[1] for (w, _, _) in params]
    d_pad = max(128, _round_up(max(dims), 128))
    b_pad = max(16, _round_up(batch, 16))

    tc = _largest_divisor_leq(num_steps, time_chunk)
    if batch_block is None:
        # Two batch blocks (-> both v7x TensorCores) once the padded batch is
        # large enough to keep 16-row bf16 tiles per block.
        bb = b_pad // 2 if (b_pad % 32 == 0) else b_pad
    else:
        bb = batch_block
    assert b_pad % bb == 0 and bb % 8 == 0, "batch_block must be mult of 8"
    nb, nt = b_pad // bb, num_steps // tc

    # Zero-pad x / weights / biases / tau logits.  Zero weight ROWS for padded
    # input lanes keep all real lanes exact; padded lanes are sliced off below.
    xp = jnp.zeros((num_steps, b_pad, d_pad), matmul_dtype)
    xp = xp.at[:, :batch, :in_size].set(x.astype(matmul_dtype))

    flat_params = []
    for (w, b, tw) in params:
        fi, fo = w.shape
        wp = jnp.zeros((d_pad, d_pad), matmul_dtype).at[:fi, :fo].set(
            w.astype(matmul_dtype))
        bp = jnp.zeros((1, d_pad), jnp.float32).at[:, :fo].set(
            jnp.reshape(b, (1, fo)).astype(jnp.float32))
        tp = jnp.zeros((1, d_pad), jnp.float32).at[:, :fo].set(
            jnp.reshape(tw, (1, fo)).astype(jnp.float32))
        flat_params += [wp, bp, tp]

    kernel = _make_snn_kernel(
        num_layers=num_layers, tc=tc, bb=bb, d=d_pad, dt=float(dt),
        min_tau=float(min_tau), threshold=float(v_threshold),
        v_rest=float(v_rest), reset_mechanism=reset_mechanism,
        output_mem=output_mem, unroll=min(8, tc), matmul_dtype=matmul_dtype)

    vmem_spec = pl.BlockSpec(memory_space=pltpu.MemorySpace.VMEM)
    blk_spec = pl.BlockSpec((tc, bb, d_pad), lambda bidx, tidx: (tidx, bidx, 0))

    if output_mem:
        out_shape = (
            jax.ShapeDtypeStruct((num_steps, b_pad, d_pad), jnp.float32),
            jax.ShapeDtypeStruct((num_steps, b_pad, d_pad), jnp.float32))
        out_specs = (blk_spec, blk_spec)
    else:
        out_shape = jax.ShapeDtypeStruct((num_steps, b_pad, d_pad), jnp.float32)
        out_specs = blk_spec

    # Explicit VMEM budget (sized so realistic configs stay under v7x's 64 MiB).
    mm_bytes = jnp.dtype(matmul_dtype).itemsize
    est = (2 * tc * bb * d_pad * mm_bytes                          # x (dbl buf)
           + (2 if output_mem else 1) * 2 * tc * bb * d_pad * 4    # outputs
           + num_layers * (d_pad * d_pad * mm_bytes + 2 * d_pad * 4)  # params
           + 2 * tc * bb * d_pad * 4                               # cur + spk
           + num_layers * bb * d_pad * 4)                          # membranes
    vmem_limit = int(min(64 << 20, max(16 << 20, 2 * est + (2 << 20))))

    result = pl.pallas_call(
        kernel,
        out_shape=out_shape,
        grid_spec=pltpu.PrefetchScalarGridSpec(
            num_scalar_prefetch=0,
            grid=(nb, nt),
            in_specs=[blk_spec] + [vmem_spec] * (3 * num_layers),
            out_specs=out_specs,
            scratch_shapes=[
                pltpu.VMEM((tc * bb, d_pad), jnp.float32),          # currents
                pltpu.VMEM((tc * bb, d_pad), jnp.float32),          # spikes
                pltpu.VMEM((num_layers, bb, d_pad), jnp.float32),   # membranes
            ]),
        compiler_params=pltpu.CompilerParams(
            dimension_semantics=("parallel", "arbitrary"),
            vmem_limit_bytes=vmem_limit),
    )(xp, *flat_params)

    if output_mem:
        out_s, out_v = result
        return (out_s[:, :batch, :out_size], [], out_v[:, :batch, :out_size])
    return result[:, :batch, :out_size]


def _reference(x, params, *, dt, min_tau, v_threshold, v_rest,
               reset_mechanism="zero"):
    """Pure-JAX step-by-step reference with identical LIF semantics."""
    num_steps = x.shape[0]
    batch = x.shape[1]
    hp = jax.lax.Precision.HIGHEST
    vs = [jnp.zeros((batch, w.shape[1]), jnp.float32) for (w, _, _) in params]
    taus = [min_tau + _sigmoid(tw) for (_, _, tw) in params]
    out_s, out_v = [], []
    for t in range(num_steps):
        h = x[t]
        for l, (w, b, _) in enumerate(params):
            cur = jnp.dot(h, w, precision=hp,
                          preferred_element_type=jnp.float32) + b
            v = vs[l] + (dt / taus[l]) * ((v_rest - vs[l]) + cur)
            spk = (v > v_threshold).astype(jnp.float32)
            if reset_mechanism == "zero":
                v = v * (1.0 - spk) + v_rest * spk
            else:
                v = v - spk * v_threshold
            vs[l] = v
            h = spk
        out_s.append(h)
        out_v.append(vs[-1])
    return jnp.stack(out_s, axis=0), jnp.stack(out_v, axis=0)


if __name__ == "__main__":
    # Small, deterministic config consistent with the module's forward.
    num_steps = 8
    batch = 8
    in_size = 16
    hiddens = [32, 32]
    out_size = 16
    dt = 0.5
    init_tau = 0.6
    min_tau = 0.1
    v_threshold = 0.25
    v_rest = 0.0
    reset_mechanism = "zero"

    key = jax.random.PRNGKey(0)
    key, kx = jax.random.split(key)

    # Binary input spike train.
    x = (jax.random.uniform(kx, (num_steps, batch, in_size)) < 0.3).astype(
        jnp.float32)

    # Inverse-sigmoid so that tau starts at init_tau.
    init_w_tau = -log(1.0 / (init_tau - min_tau) - 1.0)

    sizes = [in_size] + hiddens + [out_size]
    params = []
    for fan_in, fan_out in zip(sizes[:-1], sizes[1:]):
        key, kw, kb, kt = jax.random.split(key, 4)
        lim = 1.0 / sqrt(fan_in)   # torch nn.Linear default init range
        w = jax.random.uniform(kw, (fan_in, fan_out), jnp.float32, -lim, lim)
        b = jax.random.uniform(kb, (1, fan_out), jnp.float32, -lim, lim)
        # Quantize to multiples of 1/256 so matmuls are exact (and the values
        # are exactly representable in bf16) regardless of MXU accumulation.
        w = jnp.round(w * 256.0) / 256.0
        b = jnp.round(b * 256.0) / 256.0
        tau_w = init_w_tau + 0.1 * jax.random.normal(kt, (1, fan_out),
                                                     jnp.float32)
        params.append((w, b, tau_w))

    # output_mem=True variant (returns spikes + membranes).
    out_s, _, out_v = snn_forward(
        x, params, dt=dt, min_tau=min_tau, v_threshold=v_threshold,
        v_rest=v_rest, reset_mechanism=reset_mechanism, output_mem=True,
        time_chunk=4)
    out_s, out_v = jax.block_until_ready((out_s, out_v))

    # output_mem=False variant (no out_v allocation / stores).
    out_s_only = snn_forward(
        x, params, dt=dt, min_tau=min_tau, v_threshold=v_threshold,
        v_rest=v_rest, reset_mechanism=reset_mechanism, output_mem=False,
        time_chunk=4)
    out_s_only = jax.block_until_ready(out_s_only)

    ref_s, ref_v = _reference(
        x, params, dt=dt, min_tau=min_tau, v_threshold=v_threshold,
        v_rest=v_rest, reset_mechanism=reset_mechanism)

    assert out_s.shape == (num_steps, batch, out_size)
    assert out_v.shape == (num_steps, batch, out_size)
    assert jnp.allclose(out_s, ref_s, atol=1e-4), "spike mismatch vs reference"
    assert jnp.allclose(out_v, ref_v, atol=1e-4), "membrane mismatch vs reference"
    assert jnp.allclose(out_s_only, ref_s, atol=1e-4), "spike-only mismatch"

    print("KERNEL_OK")
</pallas_src>

<mosaic_0001>
module attributes {stable_mosaic.version = 11 : i64} {
  func.func @kernel(%arg0: i32, %arg1: i32, %arg2: memref<4x16x128xbf16, #tpu.memory_space<vmem>>, %arg3: memref<128x128xbf16, #tpu.memory_space<vmem>>, %arg4: memref<1x128xf32, #tpu.memory_space<vmem>>, %arg5: memref<1x128xf32, #tpu.memory_space<vmem>>, %arg6: memref<128x128xbf16, #tpu.memory_space<vmem>>, %arg7: memref<1x128xf32, #tpu.memory_space<vmem>>, %arg8: memref<1x128xf32, #tpu.memory_space<vmem>>, %arg9: memref<128x128xbf16, #tpu.memory_space<vmem>>, %arg10: memref<1x128xf32, #tpu.memory_space<vmem>>, %arg11: memref<1x128xf32, #tpu.memory_space<vmem>>, %arg12: memref<4x16x128xf32, #tpu.memory_space<vmem>>, %arg13: memref<4x16x128xf32, #tpu.memory_space<vmem>>, %arg14: memref<64x128xf32, #tpu.memory_space<vmem>>, %arg15: memref<64x128xf32, #tpu.memory_space<vmem>>, %arg16: memref<3x16x128xf32, #tpu.memory_space<vmem>>) attributes {dimension_semantics = [#tpu.dimension_semantics<parallel>, #tpu.dimension_semantics<arbitrary>], iteration_bounds = array<i64: 1, 2>, scalar_prefetch = 0 : i64, scratch_operands = 3 : i64, tpu.core_type = #tpu.core_type<tc>, window_params = [{transform_indices = @transform_0, window_bounds = array<i64: 4, 16, 128>}, {pipeline_mode = #tpu.pipeline_mode<synchronous>, transform_indices = @transform_1, window_bounds = array<i64: 128, 128>}, {pipeline_mode = #tpu.pipeline_mode<synchronous>, transform_indices = @transform_2, window_bounds = array<i64: 1, 128>}, {pipeline_mode = #tpu.pipeline_mode<synchronous>, transform_indices = @transform_3, window_bounds = array<i64: 1, 128>}, {pipeline_mode = #tpu.pipeline_mode<synchronous>, transform_indices = @transform_4, window_bounds = array<i64: 128, 128>}, {pipeline_mode = #tpu.pipeline_mode<synchronous>, transform_indices = @transform_5, window_bounds = array<i64: 1, 128>}, {pipeline_mode = #tpu.pipeline_mode<synchronous>, transform_indices = @transform_6, window_bounds = array<i64: 1, 128>}, {pipeline_mode = #tpu.pipeline_mode<synchronous>, transform_indices = @transform_7, window_bounds = array<i64: 128, 128>}, {pipeline_mode = #tpu.pipeline_mode<synchronous>, transform_indices = @transform_8, window_bounds = array<i64: 1, 128>}, {pipeline_mode = #tpu.pipeline_mode<synchronous>, transform_indices = @transform_9, window_bounds = array<i64: 1, 128>}, {transform_indices = @transform_10, window_bounds = array<i64: 4, 16, 128>}, {transform_indices = @transform_11, window_bounds = array<i64: 4, 16, 128>}]} {
    %c0_i32 = arith.constant 0 : i32
    %0 = arith.cmpi eq, %arg1, %c0_i32 : i32
    %1 = arith.extui %0 : i1 to i32
    %c0_i32_0 = arith.constant 0 : i32
    %2 = arith.cmpi ne, %1, %c0_i32_0 : i32
    scf.if %2 {
      %cst_170 = arith.constant 0.000000e+00 : f32
      %366 = vector.broadcast %cst_170 : f32 to vector<3x16x128xf32>
      %c0_171 = arith.constant 0 : index
      %c0_172 = arith.constant 0 : index
      %c0_173 = arith.constant 0 : index
      %367 = vector.load %arg16[%c0_171, %c0_172, %c0_173] : memref<3x16x128xf32, #tpu.memory_space<vmem>>, vector<3x16x128xf32>
      tpu.vector_store %arg16[%c0_171, %c0_172, %c0_173], %366 {strides = array<i32>} : memref<3x16x128xf32, #tpu.memory_space<vmem>>, vector<3x16x128xf32>,
    } else {
    }
    %c0 = arith.constant 0 : index
    %c0_1 = arith.constant 0 : index
    %3 = vector.load %arg3[%c0, %c0_1] : memref<128x128xbf16, #tpu.memory_space<vmem>>, vector<128x128xbf16>
    %c0_2 = arith.constant 0 : index
    %c0_3 = arith.constant 0 : index
    %4 = vector.load %arg4[%c0_2, %c0_3] : memref<1x128xf32, #tpu.memory_space<vmem>>, vector<1x128xf32>
    %c0_4 = arith.constant 0 : index
    %c0_5 = arith.constant 0 : index
    %5 = vector.load %arg5[%c0_4, %c0_5] : memref<1x128xf32, #tpu.memory_space<vmem>>, vector<1x128xf32>
    %cst = arith.constant 0.000000e+00 : f32
    %6 = vector.broadcast %cst : f32 to vector<1x128xf32>
    %7 = arith.subf %6, %5 : vector<1x128xf32>
    %8 = math.exp %7 : vector<1x128xf32>
    %cst_6 = arith.constant 1.000000e+00 : f32
    %9 = vector.broadcast %cst_6 : f32 to vector<1x128xf32>
    %10 = arith.addf %9, %8 : vector<1x128xf32>
    %cst_7 = arith.constant 1.000000e+00 : f32
    %11 = vector.broadcast %cst_7 : f32 to vector<1x128xf32>
    %12 = arith.divf %11, %10 : vector<1x128xf32>
    %cst_8 = arith.constant 1.000000e-01 : f32
    %13 = vector.broadcast %cst_8 : f32 to vector<1x128xf32>
    %14 = arith.addf %13, %12 : vector<1x128xf32>
    %cst_9 = arith.constant 5.000000e-01 : f32
    %15 = vector.broadcast %cst_9 : f32 to vector<1x128xf32>
    %16 = arith.divf %15, %14 : vector<1x128xf32>
    %c0_10 = arith.constant 0 : index
    %c0_11 = arith.constant 0 : index
    %17 = vector.load %arg6[%c0_10, %c0_11] : memref<128x128xbf16, #tpu.memory_space<vmem>>, vector<128x128xbf16>
    %c0_12 = arith.constant 0 : index
    %c0_13 = arith.constant 0 : index
    %18 = vector.load %arg7[%c0_12, %c0_13] : memref<1x128xf32, #tpu.memory_space<vmem>>, vector<1x128xf32>
    %c0_14 = arith.constant 0 : index
    %c0_15 = arith.constant 0 : index
    %19 = vector.load %arg8[%c0_14, %c0_15] : memref<1x128xf32, #tpu.memory_space<vmem>>, vector<1x128xf32>
    %cst_16 = arith.constant 0.000000e+00 : f32
    %20 = vector.broadcast %cst_16 : f32 to vector<1x128xf32>
    %21 = arith.subf %20, %19 : vector<1x128xf32>
    %22 = math.exp %21 : vector<1x128xf32>
    %cst_17 = arith.constant 1.000000e+00 : f32
    %23 = vector.broadcast %cst_17 : f32 to vector<1x128xf32>
    %24 = arith.addf %23, %22 : vector<1x128xf32>
    %cst_18 = arith.constant 1.000000e+00 : f32
    %25 = vector.broadcast %cst_18 : f32 to vector<1x128xf32>
    %26 = arith.divf %25, %24 : vector<1x128xf32>
    %cst_19 = arith.constant 1.000000e-01 : f32
    %27 = vector.broadcast %cst_19 : f32 to vector<1x128xf32>
    %28 = arith.addf %27, %26 : vector<1x128xf32>
    %cst_20 = arith.constant 5.000000e-01 : f32
    %29 = vector.broadcast %cst_20 : f32 to vector<1x128xf32>
    %30 = arith.divf %29, %28 : vector<1x128xf32>
    %c0_21 = arith.constant 0 : index
    %c0_22 = arith.constant 0 : index
    %31 = vector.load %arg9[%c0_21, %c0_22] : memref<128x128xbf16, #tpu.memory_space<vmem>>, vector<128x128xbf16>
    %c0_23 = arith.constant 0 : index
    %c0_24 = arith.constant 0 : index
    %32 = vector.load %arg10[%c0_23, %c0_24] : memref<1x128xf32, #tpu.memory_space<vmem>>, vector<1x128xf32>
    %c0_25 = arith.constant 0 : index
    %c0_26 = arith.constant 0 : index
    %33 = vector.load %arg11[%c0_25, %c0_26] : memref<1x128xf32, #tpu.memory_space<vmem>>, vector<1x128xf32>
    %cst_27 = arith.constant 0.000000e+00 : f32
    %34 = vector.broadcast %cst_27 : f32 to vector<1x128xf32>
    %35 = arith.subf %34, %33 : vector<1x128xf32>
    %36 = math.exp %35 : vector<1x128xf32>
    %cst_28 = arith.constant 1.000000e+00 : f32
    %37 = vector.broadcast %cst_28 : f32 to vector<1x128xf32>
    %38 = arith.addf %37, %36 : vector<1x128xf32>
    %cst_29 = arith.constant 1.000000e+00 : f32
    %39 = vector.broadcast %cst_29 : f32 to vector<1x128xf32>
    %40 = arith.divf %39, %38 : vector<1x128xf32>
    %cst_30 = arith.constant 1.000000e-01 : f32
    %41 = vector.broadcast %cst_30 : f32 to vector<1x128xf32>
    %42 = arith.addf %41, %40 : vector<1x128xf32>
    %cst_31 = arith.constant 5.000000e-01 : f32
    %43 = vector.broadcast %cst_31 : f32 to vector<1x128xf32>
    %44 = arith.divf %43, %42 : vector<1x128xf32>
    %c0_32 = arith.constant 0 : index
    %c0_33 = arith.constant 0 : index
    %c0_34 = arith.constant 0 : index
    %45 = vector.load %arg2[%c0_32, %c0_33, %c0_34] : memref<4x16x128xbf16, #tpu.memory_space<vmem>>, vector<4x16x128xbf16>
    %46 = vector.shape_cast %45 : vector<4x16x128xbf16> to vector<64x128xbf16>
    %cst_35 = arith.constant dense<0.000000e+00> : vector<64x128xf32>
    %47 = tpu.matmul %46, %3, %cst_35 {dimension_numbers = #tpu.dot_dimension_numbers<[1], [0], [0], [1], [0, 0, 1, 1], [], []>} : vector<64x128xbf16>, vector<128x128xbf16>, vector<64x128xf32> -> vector<64x128xf32>
    %48 = vector.broadcast %4 : vector<1x128xf32> to vector<64x128xf32>
    %49 = arith.addf %47, %48 : vector<64x128xf32>
    %c0_36 = arith.constant 0 : index
    %c0_37 = arith.constant 0 : index
    %50 = vector.load %arg14[%c0_36, %c0_37] : memref<64x128xf32, #tpu.memory_space<vmem>>, vector<64x128xf32>
    tpu.vector_store %arg14[%c0_36, %c0_37], %49 {strides = array<i32>} : memref<64x128xf32, #tpu.memory_space<vmem>>, vector<64x128xf32>,
    %c0_38 = arith.constant 0 : index
    %c0_39 = arith.constant 0 : index
    %c0_40 = arith.constant 0 : index
    %51 = vector.load %arg16[%c0_38, %c0_39, %c0_40] : memref<3x16x128xf32, #tpu.memory_space<vmem>>, vector<1x16x128xf32>
    %52 = vector.shape_cast %51 : vector<1x16x128xf32> to vector<16x128xf32>
    %c0_i32_41 = arith.constant 0 : i32
    %c16_i32 = arith.constant 16 : i32
    %53 = arith.muli %c0_i32_41, %c16_i32 : i32
    %54 = tpu.assume_multiple %53, 16 : i32
    %55 = arith.index_cast %54 : i32 to index
    %c0_42 = arith.constant 0 : index
    %56 = vector.load %arg14[%55, %c0_42] : memref<64x128xf32, #tpu.memory_space<vmem>>, vector<16x128xf32>
    %cst_43 = arith.constant 0.000000e+00 : f32
    %57 = vector.broadcast %cst_43 : f32 to vector<16x128xf32>
    %58 = arith.subf %57, %52 : vector<16x128xf32>
    %59 = arith.addf %58, %56 : vector<16x128xf32>
    %60 = vector.broadcast %16 : vector<1x128xf32> to vector<16x128xf32>
    %61 = arith.mulf %60, %59 : vector<16x128xf32>
    %62 = arith.addf %52, %61 : vector<16x128xf32>
    %cst_44 = arith.constant 2.500000e-01 : f32
    %63 = vector.broadcast %cst_44 : f32 to vector<16x128xf32>
    %64 = arith.cmpf ogt, %62, %63 : vector<16x128xf32>
    %65 = arith.extui %64 : vector<16x128xi1> to vector<16x128xi32>
    %66 = arith.sitofp %65 : vector<16x128xi32> to vector<16x128xf32>
    %cst_45 = arith.constant 1.000000e+00 : f32
    %67 = vector.broadcast %cst_45 : f32 to vector<16x128xf32>
    %68 = arith.subf %67, %66 : vector<16x128xf32>
    %69 = arith.mulf %62, %68 : vector<16x128xf32>
    %cst_46 = arith.constant 0.000000e+00 : f32
    %70 = vector.broadcast %cst_46 : f32 to vector<16x128xf32>
    %71 = arith.mulf %70, %66 : vector<16x128xf32>
    %72 = arith.addf %69, %71 : vector<16x128xf32>
    %73 = arith.index_cast %54 : i32 to index
    %c0_47 = arith.constant 0 : index
    %74 = vector.load %arg15[%73, %c0_47] : memref<64x128xf32, #tpu.memory_space<vmem>>, vector<16x128xf32>
    tpu.vector_store %arg15[%73, %c0_47], %66 {strides = array<i32>} : memref<64x128xf32, #tpu.memory_space<vmem>>, vector<16x128xf32>,
    %c1_i32 = arith.constant 1 : i32
    %c16_i32_48 = arith.constant 16 : i32
    %75 = arith.muli %c1_i32, %c16_i32_48 : i32
    %76 = tpu.assume_multiple %75, 16 : i32
    %77 = arith.index_cast %76 : i32 to index
    %c0_49 = arith.constant 0 : index
    %78 = vector.load %arg14[%77, %c0_49] : memref<64x128xf32, #tpu.memory_space<vmem>>, vector<16x128xf32>
    %cst_50 = arith.constant 0.000000e+00 : f32
    %79 = vector.broadcast %cst_50 : f32 to vector<16x128xf32>
    %80 = arith.subf %79, %72 : vector<16x128xf32>
    %81 = arith.addf %80, %78 : vector<16x128xf32>
    %82 = vector.broadcast %16 : vector<1x128xf32> to vector<16x128xf32>
    %83 = arith.mulf %82, %81 : vector<16x128xf32>
    %84 = arith.addf %72, %83 : vector<16x128xf32>
    %cst_51 = arith.constant 2.500000e-01 : f32
    %85 = vector.broadcast %cst_51 : f32 to vector<16x128xf32>
    %86 = arith.cmpf ogt, %84, %85 : vector<16x128xf32>
    %87 = arith.extui %86 : vector<16x128xi1> to vector<16x128xi32>
    %88 = arith.sitofp %87 : vector<16x128xi32> to vector<16x128xf32>
    %cst_52 = arith.constant 1.000000e+00 : f32
    %89 = vector.broadcast %cst_52 : f32 to vector<16x128xf32>
    %90 = arith.subf %89, %88 : vector<16x128xf32>
    %91 = arith.mulf %84, %90 : vector<16x128xf32>
    %cst_53 = arith.constant 0.000000e+00 : f32
    %92 = vector.broadcast %cst_53 : f32 to vector<16x128xf32>
    %93 = arith.mulf %92, %88 : vector<16x128xf32>
    %94 = arith.addf %91, %93 : vector<16x128xf32>
    %95 = arith.index_cast %76 : i32 to index
    %c0_54 = arith.constant 0 : index
    %96 = vector.load %arg15[%95, %c0_54] : memref<64x128xf32, #tpu.memory_space<vmem>>, vector<16x128xf32>
    tpu.vector_store %arg15[%95, %c0_54], %88 {strides = array<i32>} : memref<64x128xf32, #tpu.memory_space<vmem>>, vector<16x128xf32>,
    %c2_i32 = arith.constant 2 : i32
    %c16_i32_55 = arith.constant 16 : i32
    %97 = arith.muli %c2_i32, %c16_i32_55 : i32
    %98 = tpu.assume_multiple %97, 16 : i32
    %99 = arith.index_cast %98 : i32 to index
    %c0_56 = arith.constant 0 : index
    %100 = vector.load %arg14[%99, %c0_56] : memref<64x128xf32, #tpu.memory_space<vmem>>, vector<16x128xf32>
    %cst_57 = arith.constant 0.000000e+00 : f32
    %101 = vector.broadcast %cst_57 : f32 to vector<16x128xf32>
    %102 = arith.subf %101, %94 : vector<16x128xf32>
    %103 = arith.addf %102, %100 : vector<16x128xf32>
    %104 = vector.broadcast %16 : vector<1x128xf32> to vector<16x128xf32>
    %105 = arith.mulf %104, %103 : vector<16x128xf32>
    %106 = arith.addf %94, %105 : vector<16x128xf32>
    %cst_58 = arith.constant 2.500000e-01 : f32
    %107 = vector.broadcast %cst_58 : f32 to vector<16x128xf32>
    %108 = arith.cmpf ogt, %106, %107 : vector<16x128xf32>
    %109 = arith.extui %108 : vector<16x128xi1> to vector<16x128xi32>
    %110 = arith.sitofp %109 : vector<16x128xi32> to vector<16x128xf32>
    %cst_59 = arith.constant 1.000000e+00 : f32
    %111 = vector.broadcast %cst_59 : f32 to vector<16x128xf32>
    %112 = arith.subf %111, %110 : vector<16x128xf32>
    %113 = arith.mulf %106, %112 : vector<16x128xf32>
    %cst_60 = arith.constant 0.000000e+00 : f32
    %114 = vector.broadcast %cst_60 : f32 to vector<16x128xf32>
    %115 = arith.mulf %114, %110 : vector<16x128xf32>
    %116 = arith.addf %113, %115 : vector<16x128xf32>
    %117 = arith.index_cast %98 : i32 to index
    %c0_61 = arith.constant 0 : index
    %118 = vector.load %arg15[%117, %c0_61] : memref<64x128xf32, #tpu.memory_space<vmem>>, vector<16x128xf32>
    tpu.vector_store %arg15[%117, %c0_61], %110 {strides = array<i32>} : memref<64x128xf32, #tpu.memory_space<vmem>>, vector<16x128xf32>,
    %c3_i32 = arith.constant 3 : i32
    %c16_i32_62 = arith.constant 16 : i32
    %119 = arith.muli %c3_i32, %c16_i32_62 : i32
    %120 = tpu.assume_multiple %119, 16 : i32
    %121 = arith.index_cast %120 : i32 to index
    %c0_63 = arith.constant 0 : index
    %122 = vector.load %arg14[%121, %c0_63] : memref<64x128xf32, #tpu.memory_space<vmem>>, vector<16x128xf32>
    %cst_64 = arith.constant 0.000000e+00 : f32
    %123 = vector.broadcast %cst_64 : f32 to vector<16x128xf32>
    %124 = arith.subf %123, %116 : vector<16x128xf32>
    %125 = arith.addf %124, %122 : vector<16x128xf32>
    %126 = vector.broadcast %16 : vector<1x128xf32> to vector<16x128xf32>
    %127 = arith.mulf %126, %125 : vector<16x128xf32>
    %128 = arith.addf %116, %127 : vector<16x128xf32>
    %cst_65 = arith.constant 2.500000e-01 : f32
    %129 = vector.broadcast %cst_65 : f32 to vector<16x128xf32>
    %130 = arith.cmpf ogt, %128, %129 : vector<16x128xf32>
    %131 = arith.extui %130 : vector<16x128xi1> to vector<16x128xi32>
    %132 = arith.sitofp %131 : vector<16x128xi32> to vector<16x128xf32>
    %cst_66 = arith.constant 1.000000e+00 : f32
    %133 = vector.broadcast %cst_66 : f32 to vector<16x128xf32>
    %134 = arith.subf %133, %132 : vector<16x128xf32>
    %135 = arith.mulf %128, %134 : vector<16x128xf32>
    %cst_67 = arith.constant 0.000000e+00 : f32
    %136 = vector.broadcast %cst_67 : f32 to vector<16x128xf32>
    %137 = arith.mulf %136, %132 : vector<16x128xf32>
    %138 = arith.addf %135, %137 : vector<16x128xf32>
    %139 = arith.index_cast %120 : i32 to index
    %c0_68 = arith.constant 0 : index
    %140 = vector.load %arg15[%139, %c0_68] : memref<64x128xf32, #tpu.memory_space<vmem>>, vector<16x128xf32>
    tpu.vector_store %arg15[%139, %c0_68], %132 {strides = array<i32>} : memref<64x128xf32, #tpu.memory_space<vmem>>, vector<16x128xf32>,
    %c4_i32 = arith.constant 4 : i32
    %c0_69 = arith.constant 0 : index
    %c0_70 = arith.constant 0 : index
    %c0_71 = arith.constant 0 : index
    %141 = vector.load %arg16[%c0_69, %c0_70, %c0_71] : memref<3x16x128xf32, #tpu.memory_space<vmem>>, vector<1x16x128xf32>
    %142 = vector.shape_cast %141 : vector<1x16x128xf32> to vector<16x128xf32>
    %143 = vector.shape_cast %138 : vector<16x128xf32> to vector<1x16x128xf32>
    tpu.vector_store %arg16[%c0_69, %c0_70, %c0_71], %143 {strides = array<i32>} : memref<3x16x128xf32, #tpu.memory_space<vmem>>, vector<1x16x128xf32>,
    %c0_72 = arith.constant 0 : index
    %c0_73 = arith.constant 0 : index
    %144 = vector.load %arg15[%c0_72, %c0_73] : memref<64x128xf32, #tpu.memory_space<vmem>>, vector<64x128xf32>
    %145 = arith.truncf %144 : vector<64x128xf32> to vector<64x128xbf16>
    %cst_74 = arith.constant dense<0.000000e+00> : vector<64x128xf32>
    %146 = tpu.matmul %145, %17, %cst_74 {dimension_numbers = #tpu.dot_dimension_numbers<[1], [0], [0], [1], [0, 0, 1, 1], [], []>} : vector<64x128xbf16>, vector<128x128xbf16>, vector<64x128xf32> -> vector<64x128xf32>
    %147 = vector.broadcast %18 : vector<1x128xf32> to vector<64x128xf32>
    %148 = arith.addf %146, %147 : vector<64x128xf32>
    %c0_75 = arith.constant 0 : index
    %c0_76 = arith.constant 0 : index
    %149 = vector.load %arg14[%c0_75, %c0_76] : memref<64x128xf32, #tpu.memory_space<vmem>>, vector<64x128xf32>
    tpu.vector_store %arg14[%c0_75, %c0_76], %148 {strides = array<i32>} : memref<64x128xf32, #tpu.memory_space<vmem>>, vector<64x128xf32>,
    %c1 = arith.constant 1 : index
    %c0_77 = arith.constant 0 : index
    %c0_78 = arith.constant 0 : index
    %150 = vector.load %arg16[%c1, %c0_77, %c0_78] : memref<3x16x128xf32, #tpu.memory_space<vmem>>, vector<1x16x128xf32>
    %151 = vector.shape_cast %150 : vector<1x16x128xf32> to vector<16x128xf32>
    %c0_i32_79 = arith.constant 0 : i32
    %c16_i32_80 = arith.constant 16 : i32
    %152 = arith.muli %c0_i32_79, %c16_i32_80 : i32
    %153 = tpu.assume_multiple %152, 16 : i32
    %154 = arith.index_cast %153 : i32 to index
    %c0_81 = arith.constant 0 : index
    %155 = vector.load %arg14[%154, %c0_81] : memref<64x128xf32, #tpu.memory_space<vmem>>, vector<16x128xf32>
    %cst_82 = arith.constant 0.000000e+00 : f32
    %156 = vector.broadcast %cst_82 : f32 to vector<16x128xf32>
    %157 = arith.subf %156, %151 : vector<16x128xf32>
    %158 = arith.addf %157, %155 : vector<16x128xf32>
    %159 = vector.broadcast %30 : vector<1x128xf32> to vector<16x128xf32>
    %160 = arith.mulf %159, %158 : vector<16x128xf32>
    %161 = arith.addf %151, %160 : vector<16x128xf32>
    %cst_83 = arith.constant 2.500000e-01 : f32
    %162 = vector.broadcast %cst_83 : f32 to vector<16x128xf32>
    %163 = arith.cmpf ogt, %161, %162 : vector<16x128xf32>
    %164 = arith.extui %163 : vector<16x128xi1> to vector<16x128xi32>
    %165 = arith.sitofp %164 : vector<16x128xi32> to vector<16x128xf32>
    %cst_84 = arith.constant 1.000000e+00 : f32
    %166 = vector.broadcast %cst_84 : f32 to vector<16x128xf32>
    %167 = arith.subf %166, %165 : vector<16x128xf32>
    %168 = arith.mulf %161, %167 : vector<16x128xf32>
    %cst_85 = arith.constant 0.000000e+00 : f32
    %169 = vector.broadcast %cst_85 : f32 to vector<16x128xf32>
    %170 = arith.mulf %169, %165 : vector<16x128xf32>
    %171 = arith.addf %168, %170 : vector<16x128xf32>
    %172 = arith.index_cast %153 : i32 to index
    %c0_86 = arith.constant 0 : index
    %173 = vector.load %arg15[%172, %c0_86] : memref<64x128xf32, #tpu.memory_space<vmem>>, vector<16x128xf32>
    tpu.vector_store %arg15[%172, %c0_86], %165 {strides = array<i32>} : memref<64x128xf32, #tpu.memory_space<vmem>>, vector<16x128xf32>,
    %c1_i32_87 = arith.constant 1 : i32
    %c16_i32_88 = arith.constant 16 : i32
    %174 = arith.muli %c1_i32_87, %c16_i32_88 : i32
    %175 = tpu.assume_multiple %174, 16 : i32
    %176 = arith.index_cast %175 : i32 to index
    %c0_89 = arith.constant 0 : index
    %177 = vector.load %arg14[%176, %c0_89] : memref<64x128xf32, #tpu.memory_space<vmem>>, vector<16x128xf32>
    %cst_90 = arith.constant 0.000000e+00 : f32
    %178 = vector.broadcast %cst_90 : f32 to vector<16x128xf32>
    %179 = arith.subf %178, %171 : vector<16x128xf32>
    %180 = arith.addf %179, %177 : vector<16x128xf32>
    %181 = vector.broadcast %30 : vector<1x128xf32> to vector<16x128xf32>
    %182 = arith.mulf %181, %180 : vector<16x128xf32>
    %183 = arith.addf %171, %182 : vector<16x128xf32>
    %cst_91 = arith.constant 2.500000e-01 : f32
    %184 = vector.broadcast %cst_91 : f32 to vector<16x128xf32>
    %185 = arith.cmpf ogt, %183, %184 : vector<16x128xf32>
    %186 = arith.extui %185 : vector<16x128xi1> to vector<16x128xi32>
    %187 = arith.sitofp %186 : vector<16x128xi32> to vector<16x128xf32>
    %cst_92 = arith.constant 1.000000e+00 : f32
    %188 = vector.broadcast %cst_92 : f32 to vector<16x128xf32>
    %189 = arith.subf %188, %187 : vector<16x128xf32>
    %190 = arith.mulf %183, %189 : vector<16x128xf32>
    %cst_93 = arith.constant 0.000000e+00 : f32
    %191 = vector.broadcast %cst_93 : f32 to vector<16x128xf32>
    %192 = arith.mulf %191, %187 : vector<16x128xf32>
    %193 = arith.addf %190, %192 : vector<16x128xf32>
    %194 = arith.index_cast %175 : i32 to index
    %c0_94 = arith.constant 0 : index
    %195 = vector.load %arg15[%194, %c0_94] : memref<64x128xf32, #tpu.memory_space<vmem>>, vector<16x128xf32>
    tpu.vector_store %arg15[%194, %c0_94], %187 {strides = array<i32>} : memref<64x128xf32, #tpu.memory_space<vmem>>, vector<16x128xf32>,
    %c2_i32_95 = arith.constant 2 : i32
    %c16_i32_96 = arith.constant 16 : i32
    %196 = arith.muli %c2_i32_95, %c16_i32_96 : i32
    %197 = tpu.assume_multiple %196, 16 : i32
    %198 = arith.index_cast %197 : i32 to index
    %c0_97 = arith.constant 0 : index
    %199 = vector.load %arg14[%198, %c0_97] : memref<64x128xf32, #tpu.memory_space<vmem>>, vector<16x128xf32>
    %cst_98 = arith.constant 0.000000e+00 : f32
    %200 = vector.broadcast %cst_98 : f32 to vector<16x128xf32>
    %201 = arith.subf %200, %193 : vector<16x128xf32>
    %202 = arith.addf %201, %199 : vector<16x128xf32>
    %203 = vector.broadcast %30 : vector<1x128xf32> to vector<16x128xf32>
    %204 = arith.mulf %203, %202 : vector<16x128xf32>
    %205 = arith.addf %193, %204 : vector<16x128xf32>
    %cst_99 = arith.constant 2.500000e-01 : f32
    %206 = vector.broadcast %cst_99 : f32 to vector<16x128xf32>
    %207 = arith.cmpf ogt, %205, %206 : vector<16x128xf32>
    %208 = arith.extui %207 : vector<16x128xi1> to vector<16x128xi32>
    %209 = arith.sitofp %208 : vector<16x128xi32> to vector<16x128xf32>
    %cst_100 = arith.constant 1.000000e+00 : f32
    %210 = vector.broadcast %cst_100 : f32 to vector<16x128xf32>
    %211 = arith.subf %210, %209 : vector<16x128xf32>
    %212 = arith.mulf %205, %211 : vector<16x128xf32>
    %cst_101 = arith.constant 0.000000e+00 : f32
    %213 = vector.broadcast %cst_101 : f32 to vector<16x128xf32>
    %214 = arith.mulf %213, %209 : vector<16x128xf32>
    %215 = arith.addf %212, %214 : vector<16x128xf32>
    %216 = arith.index_cast %197 : i32 to index
    %c0_102 = arith.constant 0 : index
    %217 = vector.load %arg15[%216, %c0_102] : memref<64x128xf32, #tpu.memory_space<vmem>>, vector<16x128xf32>
    tpu.vector_store %arg15[%216, %c0_102], %209 {strides = array<i32>} : memref<64x128xf32, #tpu.memory_space<vmem>>, vector<16x128xf32>,
    %c3_i32_103 = arith.constant 3 : i32
    %c16_i32_104 = arith.constant 16 : i32
    %218 = arith.muli %c3_i32_103, %c16_i32_104 : i32
    %219 = tpu.assume_multiple %218, 16 : i32
    %220 = arith.index_cast %219 : i32 to index
    %c0_105 = arith.constant 0 : index
    %221 = vector.load %arg14[%220, %c0_105] : memref<64x128xf32, #tpu.memory_space<vmem>>, vector<16x128xf32>
    %cst_106 = arith.constant 0.000000e+00 : f32
    %222 = vector.broadcast %cst_106 : f32 to vector<16x128xf32>
    %223 = arith.subf %222, %215 : vector<16x128xf32>
    %224 = arith.addf %223, %221 : vector<16x128xf32>
    %225 = vector.broadcast %30 : vector<1x128xf32> to vector<16x128xf32>
    %226 = arith.mulf %225, %224 : vector<16x128xf32>
    %227 = arith.addf %215, %226 : vector<16x128xf32>
    %cst_107 = arith.constant 2.500000e-01 : f32
    %228 = vector.broadcast %cst_107 : f32 to vector<16x128xf32>
    %229 = arith.cmpf ogt, %227, %228 : vector<16x128xf32>
    %230 = arith.extui %229 : vector<16x128xi1> to vector<16x128xi32>
    %231 = arith.sitofp %230 : vector<16x128xi32> to vector<16x128xf32>
    %cst_108 = arith.constant 1.000000e+00 : f32
    %232 = vector.broadcast %cst_108 : f32 to vector<16x128xf32>
    %233 = arith.subf %232, %231 : vector<16x128xf32>
    %234 = arith.mulf %227, %233 : vector<16x128xf32>
    %cst_109 = arith.constant 0.000000e+00 : f32
    %235 = vector.broadcast %cst_109 : f32 to vector<16x128xf32>
    %236 = arith.mulf %235, %231 : vector<16x128xf32>
    %237 = arith.addf %234, %236 : vector<16x128xf32>
    %238 = arith.index_cast %219 : i32 to index
    %c0_110 = arith.constant 0 : index
    %239 = vector.load %arg15[%238, %c0_110] : memref<64x128xf32, #tpu.memory_space<vmem>>, vector<16x128xf32>
    tpu.vector_store %arg15[%238, %c0_110], %231 {strides = array<i32>} : memref<64x128xf32, #tpu.memory_space<vmem>>, vector<16x128xf32>,
    %c4_i32_111 = arith.constant 4 : i32
    %c1_112 = arith.constant 1 : index
    %c0_113 = arith.constant 0 : index
    %c0_114 = arith.constant 0 : index
    %240 = vector.load %arg16[%c1_112, %c0_113, %c0_114] : memref<3x16x128xf32, #tpu.memory_space<vmem>>, vector<1x16x128xf32>
    %241 = vector.shape_cast %240 : vector<1x16x128xf32> to vector<16x128xf32>
    %242 = vector.shape_cast %237 : vector<16x128xf32> to vector<1x16x128xf32>
    tpu.vector_store %arg16[%c1_112, %c0_113, %c0_114], %242 {strides = array<i32>} : memref<3x16x128xf32, #tpu.memory_space<vmem>>, vector<1x16x128xf32>,
    %c0_115 = arith.constant 0 : index
    %c0_116 = arith.constant 0 : index
    %243 = vector.load %arg15[%c0_115, %c0_116] : memref<64x128xf32, #tpu.memory_space<vmem>>, vector<64x128xf32>
    %244 = arith.truncf %243 : vector<64x128xf32> to vector<64x128xbf16>
    %cst_117 = arith.constant dense<0.000000e+00> : vector<64x128xf32>
    %245 = tpu.matmul %244, %31, %cst_117 {dimension_numbers = #tpu.dot_dimension_numbers<[1], [0], [0], [1], [0, 0, 1, 1], [], []>} : vector<64x128xbf16>, vector<128x128xbf16>, vector<64x128xf32> -> vector<64x128xf32>
    %246 = vector.broadcast %32 : vector<1x128xf32> to vector<64x128xf32>
    %247 = arith.addf %245, %246 : vector<64x128xf32>
    %c0_118 = arith.constant 0 : index
    %c0_119 = arith.constant 0 : index
    %248 = vector.load %arg14[%c0_118, %c0_119] : memref<64x128xf32, #tpu.memory_space<vmem>>, vector<64x128xf32>
    tpu.vector_store %arg14[%c0_118, %c0_119], %247 {strides = array<i32>} : memref<64x128xf32, #tpu.memory_space<vmem>>, vector<64x128xf32>,
    %c2 = arith.constant 2 : index
    %c0_120 = arith.constant 0 : index
    %c0_121 = arith.constant 0 : index
    %249 = vector.load %arg16[%c2, %c0_120, %c0_121] : memref<3x16x128xf32, #tpu.memory_space<vmem>>, vector<1x16x128xf32>
    %250 = vector.shape_cast %249 : vector<1x16x128xf32> to vector<16x128xf32>
    %c0_i32_122 = arith.constant 0 : i32
    %c16_i32_123 = arith.constant 16 : i32
    %251 = arith.muli %c0_i32_122, %c16_i32_123 : i32
    %252 = tpu.assume_multiple %251, 16 : i32
    %253 = arith.index_cast %252 : i32 to index
    %c0_124 = arith.constant 0 : index
    %254 = vector.load %arg14[%253, %c0_124] : memref<64x128xf32, #tpu.memory_space<vmem>>, vector<16x128xf32>
    %cst_125 = arith.constant 0.000000e+00 : f32
    %255 = vector.broadcast %cst_125 : f32 to vector<16x128xf32>
    %256 = arith.subf %255, %250 : vector<16x128xf32>
    %257 = arith.addf %256, %254 : vector<16x128xf32>
    %258 = vector.broadcast %44 : vector<1x128xf32> to vector<16x128xf32>
    %259 = arith.mulf %258, %257 : vector<16x128xf32>
    %260 = arith.addf %250, %259 : vector<16x128xf32>
    %cst_126 = arith.constant 2.500000e-01 : f32
    %261 = vector.broadcast %cst_126 : f32 to vector<16x128xf32>
    %262 = arith.cmpf ogt, %260, %261 : vector<16x128xf32>
    %263 = arith.extui %262 : vector<16x128xi1> to vector<16x128xi32>
    %264 = arith.sitofp %263 : vector<16x128xi32> to vector<16x128xf32>
    %cst_127 = arith.constant 1.000000e+00 : f32
    %265 = vector.broadcast %cst_127 : f32 to vector<16x128xf32>
    %266 = arith.subf %265, %264 : vector<16x128xf32>
    %267 = arith.mulf %260, %266 : vector<16x128xf32>
    %cst_128 = arith.constant 0.000000e+00 : f32
    %268 = vector.broadcast %cst_128 : f32 to vector<16x128xf32>
    %269 = arith.mulf %268, %264 : vector<16x128xf32>
    %270 = arith.addf %267, %269 : vector<16x128xf32>
    %271 = arith.index_cast %c0_i32_122 : i32 to index
    %c0_129 = arith.constant 0 : index
    %c0_130 = arith.constant 0 : index
    %272 = vector.load %arg12[%271, %c0_129, %c0_130] : memref<4x16x128xf32, #tpu.memory_space<vmem>>, vector<1x16x128xf32>
    %273 = vector.shape_cast %272 : vector<1x16x128xf32> to vector<16x128xf32>
    %274 = vector.shape_cast %264 : vector<16x128xf32> to vector<1x16x128xf32>
    tpu.vector_store %arg12[%271, %c0_129, %c0_130], %274 {strides = array<i32>} : memref<4x16x128xf32, #tpu.memory_space<vmem>>, vector<1x16x128xf32>,
    %275 = arith.index_cast %c0_i32_122 : i32 to index
    %c0_131 = arith.constant 0 : index
    %c0_132 = arith.constant 0 : index
    %276 = vector.load %arg13[%275, %c0_131, %c0_132] : memref<4x16x128xf32, #tpu.memory_space<vmem>>, vector<1x16x128xf32>
    %277 = vector.shape_cast %276 : vector<1x16x128xf32> to vector<16x128xf32>
    %278 = vector.shape_cast %270 : vector<16x128xf32> to vector<1x16x128xf32>
    tpu.vector_store %arg13[%275, %c0_131, %c0_132], %278 {strides = array<i32>} : memref<4x16x128xf32, #tpu.memory_space<vmem>>, vector<1x16x128xf32>,
    %c1_i32_133 = arith.constant 1 : i32
    %c16_i32_134 = arith.constant 16 : i32
    %279 = arith.muli %c1_i32_133, %c16_i32_134 : i32
    %280 = tpu.assume_multiple %279, 16 : i32
    %281 = arith.index_cast %280 : i32 to index
    %c0_135 = arith.constant 0 : index
    %282 = vector.load %arg14[%281, %c0_135] : memref<64x128xf32, #tpu.memory_space<vmem>>, vector<16x128xf32>
    %cst_136 = arith.constant 0.000000e+00 : f32
    %283 = vector.broadcast %cst_136 : f32 to vector<16x128xf32>
    %284 = arith.subf %283, %270 : vector<16x128xf32>
    %285 = arith.addf %284, %282 : vector<16x128xf32>
    %286 = vector.broadcast %44 : vector<1x128xf32> to vector<16x128xf32>
    %287 = arith.mulf %286, %285 : vector<16x128xf32>
    %288 = arith.addf %270, %287 : vector<16x128xf32>
    %cst_137 = arith.constant 2.500000e-01 : f32
    %289 = vector.broadcast %cst_137 : f32 to vector<16x128xf32>
    %290 = arith.cmpf ogt, %288, %289 : vector<16x128xf32>
    %291 = arith.extui %290 : vector<16x128xi1> to vector<16x128xi32>
    %292 = arith.sitofp %291 : vector<16x128xi32> to vector<16x128xf32>
    %cst_138 = arith.constant 1.000000e+00 : f32
    %293 = vector.broadcast %cst_138 : f32 to vector<16x128xf32>
    %294 = arith.subf %293, %292 : vector<16x128xf32>
    %295 = arith.mulf %288, %294 : vector<16x128xf32>
    %cst_139 = arith.constant 0.000000e+00 : f32
    %296 = vector.broadcast %cst_139 : f32 to vector<16x128xf32>
    %297 = arith.mulf %296, %292 : vector<16x128xf32>
    %298 = arith.addf %295, %297 : vector<16x128xf32>
    %299 = arith.index_cast %c1_i32_133 : i32 to index
    %c0_140 = arith.constant 0 : index
    %c0_141 = arith.constant 0 : index
    %300 = vector.load %arg12[%299, %c0_140, %c0_141] : memref<4x16x128xf32, #tpu.memory_space<vmem>>, vector<1x16x128xf32>
    %301 = vector.shape_cast %300 : vector<1x16x128xf32> to vector<16x128xf32>
    %302 = vector.shape_cast %292 : vector<16x128xf32> to vector<1x16x128xf32>
    tpu.vector_store %arg12[%299, %c0_140, %c0_141], %302 {strides = array<i32>} : memref<4x16x128xf32, #tpu.memory_space<vmem>>, vector<1x16x128xf32>,
    %303 = arith.index_cast %c1_i32_133 : i32 to index
    %c0_142 = arith.constant 0 : index
    %c0_143 = arith.constant 0 : index
    %304 = vector.load %arg13[%303, %c0_142, %c0_143] : memref<4x16x128xf32, #tpu.memory_space<vmem>>, vector<1x16x128xf32>
    %305 = vector.shape_cast %304 : vector<1x16x128xf32> to vector<16x128xf32>
    %306 = vector.shape_cast %298 : vector<16x128xf32> to vector<1x16x128xf32>
    tpu.vector_store %arg13[%303, %c0_142, %c0_143], %306 {strides = array<i32>} : memref<4x16x128xf32, #tpu.memory_space<vmem>>, vector<1x16x128xf32>,
    %c2_i32_144 = arith.constant 2 : i32
    %c16_i32_145 = arith.constant 16 : i32
    %307 = arith.muli %c2_i32_144, %c16_i32_145 : i32
    %308 = tpu.assume_multiple %307, 16 : i32
    %309 = arith.index_cast %308 : i32 to index
    %c0_146 = arith.constant 0 : index
    %310 = vector.load %arg14[%309, %c0_146] : memref<64x128xf32, #tpu.memory_space<vmem>>, vector<16x128xf32>
    %cst_147 = arith.constant 0.000000e+00 : f32
    %311 = vector.broadcast %cst_147 : f32 to vector<16x128xf32>
    %312 = arith.subf %311, %298 : vector<16x128xf32>
    %313 = arith.addf %312, %310 : vector<16x128xf32>
    %314 = vector.broadcast %44 : vector<1x128xf32> to vector<16x128xf32>
    %315 = arith.mulf %314, %313 : vector<16x128xf32>
    %316 = arith.addf %298, %315 : vector<16x128xf32>
    %cst_148 = arith.constant 2.500000e-01 : f32
    %317 = vector.broadcast %cst_148 : f32 to vector<16x128xf32>
    %318 = arith.cmpf ogt, %316, %317 : vector<16x128xf32>
    %319 = arith.extui %318 : vector<16x128xi1> to vector<16x128xi32>
    %320 = arith.sitofp %319 : vector<16x128xi32> to vector<16x128xf32>
    %cst_149 = arith.constant 1.000000e+00 : f32
    %321 = vector.broadcast %cst_149 : f32 to vector<16x128xf32>
    %322 = arith.subf %321, %320 : vector<16x128xf32>
    %323 = arith.mulf %316, %322 : vector<16x128xf32>
    %cst_150 = arith.constant 0.000000e+00 : f32
    %324 = vector.broadcast %cst_150 : f32 to vector<16x128xf32>
    %325 = arith.mulf %324, %320 : vector<16x128xf32>
    %326 = arith.addf %323, %325 : vector<16x128xf32>
    %327 = arith.index_cast %c2_i32_144 : i32 to index
    %c0_151 = arith.constant 0 : index
    %c0_152 = arith.constant 0 : index
    %328 = vector.load %arg12[%327, %c0_151, %c0_152] : memref<4x16x128xf32, #tpu.memory_space<vmem>>, vector<1x16x128xf32>
    %329 = vector.shape_cast %328 : vector<1x16x128xf32> to vector<16x128xf32>
    %330 = vector.shape_cast %320 : vector<16x128xf32> to vector<1x16x128xf32>
    tpu.vector_store %arg12[%327, %c0_151, %c0_152], %330 {strides = array<i32>} : memref<4x16x128xf32, #tpu.memory_space<vmem>>, vector<1x16x128xf32>,
    %331 = arith.index_cast %c2_i32_144 : i32 to index
    %c0_153 = arith.constant 0 : index
    %c0_154 = arith.constant 0 : index
    %332 = vector.load %arg13[%331, %c0_153, %c0_154] : memref<4x16x128xf32, #tpu.memory_space<vmem>>, vector<1x16x128xf32>
    %333 = vector.shape_cast %332 : vector<1x16x128xf32> to vector<16x128xf32>
    %334 = vector.shape_cast %326 : vector<16x128xf32> to vector<1x16x128xf32>
    tpu.vector_store %arg13[%331, %c0_153, %c0_154], %334 {strides = array<i32>} : memref<4x16x128xf32, #tpu.memory_space<vmem>>, vector<1x16x128xf32>,
    %c3_i32_155 = arith.constant 3 : i32
    %c16_i32_156 = arith.constant 16 : i32
    %335 = arith.muli %c3_i32_155, %c16_i32_156 : i32
    %336 = tpu.assume_multiple %335, 16 : i32
    %337 = arith.index_cast %336 : i32 to index
    %c0_157 = arith.constant 0 : index
    %338 = vector.load %arg14[%337, %c0_157] : memref<64x128xf32, #tpu.memory_space<vmem>>, vector<16x128xf32>
    %cst_158 = arith.constant 0.000000e+00 : f32
    %339 = vector.broadcast %cst_158 : f32 to vector<16x128xf32>
    %340 = arith.subf %339, %326 : vector<16x128xf32>
    %341 = arith.addf %340, %338 : vector<16x128xf32>
    %342 = vector.broadcast %44 : vector<1x128xf32> to vector<16x128xf32>
    %343 = arith.mulf %342, %341 : vector<16x128xf32>
    %344 = arith.addf %326, %343 : vector<16x128xf32>
    %cst_159 = arith.constant 2.500000e-01 : f32
    %345 = vector.broadcast %cst_159 : f32 to vector<16x128xf32>
    %346 = arith.cmpf ogt, %344, %345 : vector<16x128xf32>
    %347 = arith.extui %346 : vector<16x128xi1> to vector<16x128xi32>
    %348 = arith.sitofp %347 : vector<16x128xi32> to vector<16x128xf32>
    %cst_160 = arith.constant 1.000000e+00 : f32
    %349 = vector.broadcast %cst_160 : f32 to vector<16x128xf32>
    %350 = arith.subf %349, %348 : vector<16x128xf32>
    %351 = arith.mulf %344, %350 : vector<16x128xf32>
    %cst_161 = arith.constant 0.000000e+00 : f32
    %352 = vector.broadcast %cst_161 : f32 to vector<16x128xf32>
    %353 = arith.mulf %352, %348 : vector<16x128xf32>
    %354 = arith.addf %351, %353 : vector<16x128xf32>
    %355 = arith.index_cast %c3_i32_155 : i32 to index
    %c0_162 = arith.constant 0 : index
    %c0_163 = arith.constant 0 : index
    %356 = vector.load %arg12[%355, %c0_162, %c0_163] : memref<4x16x128xf32, #tpu.memory_space<vmem>>, vector<1x16x128xf32>
    %357 = vector.shape_cast %356 : vector<1x16x128xf32> to vector<16x128xf32>
    %358 = vector.shape_cast %348 : vector<16x128xf32> to vector<1x16x128xf32>
    tpu.vector_store %arg12[%355, %c0_162, %c0_163], %358 {strides = array<i32>} : memref<4x16x128xf32, #tpu.memory_space<vmem>>, vector<1x16x128xf32>,
    %359 = arith.index_cast %c3_i32_155 : i32 to index
    %c0_164 = arith.constant 0 : index
    %c0_165 = arith.constant 0 : index
    %360 = vector.load %arg13[%359, %c0_164, %c0_165] : memref<4x16x128xf32, #tpu.memory_space<vmem>>, vector<1x16x128xf32>
    %361 = vector.shape_cast %360 : vector<1x16x128xf32> to vector<16x128xf32>
    %362 = vector.shape_cast %354 : vector<16x128xf32> to vector<1x16x128xf32>
    tpu.vector_store %arg13[%359, %c0_164, %c0_165], %362 {strides = array<i32>} : memref<4x16x128xf32, #tpu.memory_space<vmem>>, vector<1x16x128xf32>,
    %c4_i32_166 = arith.constant 4 : i32
    %c2_167 = arith.constant 2 : index
    %c0_168 = arith.constant 0 : index
    %c0_169 = arith.constant 0 : index
    %363 = vector.load %arg16[%c2_167, %c0_168, %c0_169] : memref<3x16x128xf32, #tpu.memory_space<vmem>>, vector<1x16x128xf32>
    %364 = vector.shape_cast %363 : vector<1x16x128xf32> to vector<16x128xf32>
    %365 = vector.shape_cast %354 : vector<16x128xf32> to vector<1x16x128xf32>
    tpu.vector_store %arg16[%c2_167, %c0_168, %c0_169], %365 {strides = array<i32>} : memref<3x16x128xf32, #tpu.memory_space<vmem>>, vector<1x16x128xf32>,
    return
  }
  func.func @transform_0(%arg0: i32, %arg1: i32) -> (i32, i32, i32) {
    %c0_i32 = arith.constant 0 : i32
    %c0_i32_0 = arith.constant 0 : i32
    return %arg1, %arg0, %c0_i32 : i32, i32, i32
  }
  func.func @transform_1(%arg0: i32, %arg1: i32) -> (i32, i32) {
    %c0_i32 = arith.constant 0 : i32
    %c0_i32_0 = arith.constant 0 : i32
    %c0_i32_1 = arith.constant 0 : i32
    return %c0_i32, %c0_i32_0 : i32, i32
  }
  func.func @transform_2(%arg0: i32, %arg1: i32) -> (i32, i32) {
    %c0_i32 = arith.constant 0 : i32
    %c0_i32_0 = arith.constant 0 : i32
    %c0_i32_1 = arith.constant 0 : i32
    return %c0_i32, %c0_i32_0 : i32, i32
  }
  func.func @transform_3(%arg0: i32, %arg1: i32) -> (i32, i32) {
    %c0_i32 = arith.constant 0 : i32
    %c0_i32_0 = arith.constant 0 : i32
    %c0_i32_1 = arith.constant 0 : i32
    return %c0_i32, %c0_i32_0 : i32, i32
  }
  func.func @transform_4(%arg0: i32, %arg1: i32) -> (i32, i32) {
    %c0_i32 = arith.constant 0 : i32
    %c0_i32_0 = arith.constant 0 : i32
    %c0_i32_1 = arith.constant 0 : i32
    return %c0_i32, %c0_i32_0 : i32, i32
  }
  func.func @transform_5(%arg0: i32, %arg1: i32) -> (i32, i32) {
    %c0_i32 = arith.constant 0 : i32
    %c0_i32_0 = arith.constant 0 : i32
    %c0_i32_1 = arith.constant 0 : i32
    return %c0_i32, %c0_i32_0 : i32, i32
  }
  func.func @transform_6(%arg0: i32, %arg1: i32) -> (i32, i32) {
    %c0_i32 = arith.constant 0 : i32
    %c0_i32_0 = arith.constant 0 : i32
    %c0_i32_1 = arith.constant 0 : i32
    return %c0_i32, %c0_i32_0 : i32, i32
  }
  func.func @transform_7(%arg0: i32, %arg1: i32) -> (i32, i32) {
    %c0_i32 = arith.constant 0 : i32
    %c0_i32_0 = arith.constant 0 : i32
    %c0_i32_1 = arith.constant 0 : i32
    return %c0_i32, %c0_i32_0 : i32, i32
  }
  func.func @transform_8(%arg0: i32, %arg1: i32) -> (i32, i32) {
    %c0_i32 = arith.constant 0 : i32
    %c0_i32_0 = arith.constant 0 : i32
    %c0_i32_1 = arith.constant 0 : i32
    return %c0_i32, %c0_i32_0 : i32, i32
  }
  func.func @transform_9(%arg0: i32, %arg1: i32) -> (i32, i32) {
    %c0_i32 = arith.constant 0 : i32
    %c0_i32_0 = arith.constant 0 : i32
    %c0_i32_1 = arith.constant 0 : i32
    return %c0_i32, %c0_i32_0 : i32, i32
  }
  func.func @transform_10(%arg0: i32, %arg1: i32) -> (i32, i32, i32) {
    %c0_i32 = arith.constant 0 : i32
    %c0_i32_0 = arith.constant 0 : i32
    return %arg1, %arg0, %c0_i32 : i32, i32, i32
  }
  func.func @transform_11(%arg0: i32, %arg1: i32) -> (i32, i32, i32) {
    %c0_i32 = arith.constant 0 : i32
    %c0_i32_0 = arith.constant 0 : i32
    return %arg1, %arg0, %c0_i32 : i32, i32, i32
  }
}

</mosaic_0001>

<llo_original>
// kernel: tpu_custom_call.1
$region0: #{tpu_custom_call.1}
  #allocation0 [shape = 'u32[]', space=smem, size = 0x4, offset = 0x4, fixed_abs, tag = 'smem constant byte address 0x4 - core index']
  #allocation1 [shape = 'u32[72,128]{1,0:T(1,128)}', space=vmem, size = 0x9000, scoped, tag = 'internal scratch']
  #allocation2 [shape = 'f32[64,128]{1,0:T(8,128)}', space=vmem, size = 0x8000, scoped, tag = 'scratch operand']
  #allocation3 [shape = 'f32[64,128]{1,0:T(8,128)}', space=vmem, size = 0x8000, scoped, tag = 'scratch operand']
  #allocation4 [shape = 'f32[3,16,128]{2,1,0:T(8,128)}', space=vmem, size = 0x6000, scoped, tag = 'scratch operand']
  %s0 = inlined_call_operand.hbm [shape: bf16[8,16,128], index: 0, kind: input, shape index: {}]
  %s1 = inlined_call_operand.hbm [shape: bf16[128,128], index: 1, kind: input, shape index: {}]
  %s2 = inlined_call_operand.vmem [shape: f32[1,128], index: 2, kind: input, shape index: {}]
  %s3 = inlined_call_operand.vmem [shape: f32[1,128], index: 3, kind: input, shape index: {}]
  %s4 = inlined_call_operand.hbm [shape: bf16[128,128], index: 4, kind: input, shape index: {}]
  %s5 = inlined_call_operand.vmem [shape: f32[1,128], index: 5, kind: input, shape index: {}]
  %s6 = inlined_call_operand.vmem [shape: f32[1,128], index: 6, kind: input, shape index: {}]
  %s7 = inlined_call_operand.hbm [shape: bf16[128,128], index: 7, kind: input, shape index: {}]
  %s8 = inlined_call_operand.vmem [shape: f32[1,128], index: 8, kind: input, shape index: {}]
  %s9 = inlined_call_operand.vmem [shape: f32[1,128], index: 9, kind: input, shape index: {}]
  %s10 = inlined_call_operand.hbm [shape: f32[8,16,128], index: 10, kind: output, shape index: {0}]
  %s11 = inlined_call_operand.hbm [shape: f32[8,16,128], index: 11, kind: output, shape index: {1}]
  %12 = xla_tuple %s10, %s11
  %s13 = sld [smem:[#allocation0]]
  $region101: #{tpu_custom_call.1} parent=0
    _
  %s15 = ssub.s32 1, %s13
  %s16 = scalar_select 0, %s15, %s13
  $region1: #{tpu_custom_call.1} parent=0
    #allocation5 [shape = 'u8[32768]{0}', space=vmem, size = 0x8000, scoped, tag = 'input window, operand 0']
    #allocation6 [shape = 's32[2]{0}', space=sflag, size = 0x8, scoped, tag = 'scoped memory for tpu_custom_call.1']
    #allocation7 [shape = 's32[2]{0}', space=sflag, size = 0x8, scoped, tag = 'scoped memory for tpu_custom_call.1']
    #allocation8 [shape = 'u8[32768]{0}', space=vmem, size = 0x8000, scoped, tag = 'input window, operand 1, single buffered']
    #allocation9 [shape = 's32[1]{0}', space=sflag, size = 0x4, scoped, tag = 'scoped memory for tpu_custom_call.1']
    #allocation10 [shape = 'u8[32768]{0}', space=vmem, size = 0x8000, scoped, tag = 'input window, operand 4, single buffered']
    #allocation11 [shape = 'u8[32768]{0}', space=vmem, size = 0x8000, scoped, tag = 'input window, operand 7, single buffered']
    #allocation12 [shape = 's32[1]{0}', space=sflag, size = 0x4, scoped, tag = 'scoped memory for tpu_custom_call.1']
    #allocation13 [shape = 'u8[65536]{0}', space=vmem, size = 0x10000, scoped, tag = 'output window, operand 0']
    #allocation14 [shape = 'u8[65536]{0}', space=vmem, size = 0x10000, scoped, tag = 'output window, operand 1']
    #allocation15 [shape = 's32[2]{0}', space=sflag, size = 0x8, scoped, tag = 'scoped memory for tpu_custom_call.1']
    %17 = vsyncpa [#allocation6], 0
    %s18 = scalar_lea.sflag [#allocation6], 1
    %19 = vsyncpa %s18, 0
    %20 = vsyncpa [#allocation9], 0
    %21 = vsyncpa [#allocation12], 0
    %22 = vsyncpa [#allocation7], 0
    %s23 = scalar_lea.sflag [#allocation7], 1
    %24 = vsyncpa %s23, 0
    %25 = vsyncpa [#allocation15], 0
    %s26 = scalar_lea.sflag [#allocation15], 1
    %27 = vsyncpa %s26, 0
    loop: start=0, step=1, limit=4
    $region2: #{tpu_custom_call.1} parent=1 // loop_pre_header
      _
    $region3: #{tpu_custom_call.1} parent=1 // loop_header
      %s29 = sphi 0, %s33
      %p30 = scmp.ge.s32.totalorder %s29, 4
      %s36 = sphi 0, %s48
      %s37 = sphi 0, %s44
      %s38 = sphi 0, %s36
      %s39 = sphi 0, %s37
      %s40 = sphi 0, %s38
      %s41 = sphi 0, %s39
      %s53 = sphi 0, %s55
      %s56 = sphi 0, %s53
      %s57 = sphi 0, %s56
      %s73 = sphi 0, %s57
      %s77 = sphi 0, %s77
      %s79 = sphi 0, %s77
      %s80 = sphi 0, %s79
      %s94 = sphi 0, %s80
      %s98 = sphi 0, %s98
      %s100 = sphi 0, %s98
      %s101 = sphi 0, %s100
      %s115 = sphi 0, %s101
      %s119 = sphi 0, %s119
      %s121 = sphi 0, %s119
      %s122 = sphi 0, %s121
      %s136 = sphi 0, %s122
      %s140 = sphi 0, %s140
      %s142 = sphi 0, %s140
      %s143 = sphi 0, %s142
      %s157 = sphi 0, %s143
      %s161 = sphi 0, %s161
      %s163 = sphi 0, %s161
      %s164 = sphi 0, %s163
      %s178 = sphi 0, %s164
      %s182 = sphi 0, %s182
      %s184 = sphi 0, %s182
      %s185 = sphi 0, %s184
      %s199 = sphi 0, %s185
      %s203 = sphi 0, %s203
      %s205 = sphi 0, %s203
      %s206 = sphi 0, %s205
      %s220 = sphi 0, %s206
      %s224 = sphi 0, %s224
      %s226 = sphi 0, %s224
      %s227 = sphi 0, %s226
      %s241 = sphi 0, %s227
      %s245 = sphi 0, %s245
      %s247 = sphi 0, %s245
      %s248 = sphi 0, %s247
      %s262 = sphi 0, %s248
      %s270 = sphi 0, %s272
      %s273 = sphi 0, %s270
      %s274 = sphi 0, %s273
      %s290 = sphi 0, %s274
      %s298 = sphi 0, %s300
      %s301 = sphi 0, %s298
      %s302 = sphi 0, %s301
      %s318 = sphi 0, %s302
    $region4: #{tpu_custom_call.1} parent=1 // loop_header_branch
      %32 = sbr.rel (%p30) target = $region8
    $region5: #{tpu_custom_call.1} parent=1 // loop_body
      %s34 = ssub.s32 %s29, 1
      %s35 = ssub.s32 %s29, 2
      %s42 = sadd.s32 1, %s37
      %p43 = scmp.ge.s32.totalorder %s42, 2
      %s44 = scalar_select %p43, 0, %s42
      %s45 = sadd.s32 1, %s36
      %s46 = scalar_select %p43, %s45, %s36
      %p47 = scmp.ge.s32.totalorder %s46, 1
      %s48 = scalar_select %p47, 0, %s46
      %s49 = ssub.s32 %s37, %s44
      %s50 = ssub.s32 %s36, %s48
      %s51 = sor.u32 %s49, %s50
      %p52 = scmp.eq.s32.totalorder %s51, 0
      %s54 = sadd.s32 %s53, 1
      %s55 = scalar_select %p52, %s53, %s54
      %p58 = pneg %p52
      %p59 = scmp.eq.s32.totalorder %s29, 1
      %p60 = por %p58, %p59
      %p61 = scmp.ne.s32.totalorder %s53, %s56
      %p62 = scmp.eq.s32.totalorder %s29, 0
      %p63 = por %p61, %p62
      %p64 = scmp.ne.s32.totalorder %s53, %s56
      %p65 = scmp.eq.s32.totalorder %s34, 1
      %p66 = por %p64, %p65
      %p67 = scmp.ne.s32.totalorder %s56, %s57
      %p68 = scmp.eq.s32.totalorder %s34, 0
      %p69 = por %p67, %p68
      %p70 = scmp.ne.s32.totalorder %s56, %s57
      %p71 = scmp.eq.s32.totalorder %s35, 1
      %p72 = por %p70, %p71
      %p74 = scmp.ne.s32.totalorder %s57, %s73
      %p75 = scmp.eq.s32.totalorder %s35, 0
      %p76 = por %p74, %p75
      %s78 = sadd.s32 %s77, 1
      %p81 = scmp.eq.s32.totalorder %s29, 1
      %p82 = scmp.ne.s32.totalorder %s77, %s79
      %p83 = scmp.eq.s32.totalorder %s29, 0
      %p84 = por %p82, %p83
      %p85 = scmp.ne.s32.totalorder %s77, %s79
      %p86 = scmp.eq.s32.totalorder %s34, 1
      %p87 = por %p85, %p86
      %p88 = scmp.ne.s32.totalorder %s79, %s80
      %p89 = scmp.eq.s32.totalorder %s34, 0
      %p90 = por %p88, %p89
      %p91 = scmp.ne.s32.totalorder %s79, %s80
      %p92 = scmp.eq.s32.totalorder %s35, 1
      %p93 = por %p91, %p92
      %p95 = scmp.ne.s32.totalorder %s80, %s94
      %p96 = scmp.eq.s32.totalorder %s35, 0
      %p97 = por %p95, %p96
      %s99 = sadd.s32 %s98, 1
      %p102 = scmp.eq.s32.totalorder %s29, 1
      %p103 = scmp.ne.s32.totalorder %s98, %s100
      %p104 = scmp.eq.s32.totalorder %s29, 0
      %p105 = por %p103, %p104
      %p106 = scmp.ne.s32.totalorder %s98, %s100
      %p107 = scmp.eq.s32.totalorder %s34, 1
      %p108 = por %p106, %p107
      %p109 = scmp.ne.s32.totalorder %s100, %s101
      %p110 = scmp.eq.s32.totalorder %s34, 0
      %p111 = por %p109, %p110
      %p112 = scmp.ne.s32.totalorder %s100, %s101
      %p113 = scmp.eq.s32.totalorder %s35, 1
      %p114 = por %p112, %p113
      %p116 = scmp.ne.s32.totalorder %s101, %s115
      %p117 = scmp.eq.s32.totalorder %s35, 0
      %p118 = por %p116, %p117
      %s120 = sadd.s32 %s119, 1
      %p123 = scmp.eq.s32.totalorder %s29, 1
      %p124 = scmp.ne.s32.totalorder %s119, %s121
      %p125 = scmp.eq.s32.totalorder %s29, 0
      %p126 = por %p124, %p125
      %p127 = scmp.ne.s32.totalorder %s119, %s121
      %p128 = scmp.eq.s32.totalorder %s34, 1
      %p129 = por %p127, %p128
      %p130 = scmp.ne.s32.totalorder %s121, %s122
      %p131 = scmp.eq.s32.totalorder %s34, 0
      %p132 = por %p130, %p131
      %p133 = scmp.ne.s32.totalorder %s121, %s122
      %p134 = scmp.eq.s32.totalorder %s35, 1
      %p135 = por %p133, %p134
      %p137 = scmp.ne.s32.totalorder %s122, %s136
      %p138 = scmp.eq.s32.totalorder %s35, 0
      %p139 = por %p137, %p138
      %s141 = sadd.s32 %s140, 1
      %p144 = scmp.eq.s32.totalorder %s29, 1
      %p145 = scmp.ne.s32.totalorder %s140, %s142
      %p146 = scmp.eq.s32.totalorder %s29, 0
      %p147 = por %p145, %p146
      %p148 = scmp.ne.s32.totalorder %s140, %s142
      %p149 = scmp.eq.s32.totalorder %s34, 1
      %p150 = por %p148, %p149
      %p151 = scmp.ne.s32.totalorder %s142, %s143
      %p152 = scmp.eq.s32.totalorder %s34, 0
      %p153 = por %p151, %p152
      %p154 = scmp.ne.s32.totalorder %s142, %s143
      %p155 = scmp.eq.s32.totalorder %s35, 1
      %p156 = por %p154, %p155
      %p158 = scmp.ne.s32.totalorder %s143, %s157
      %p159 = scmp.eq.s32.totalorder %s35, 0
      %p160 = por %p158, %p159
      %s162 = sadd.s32 %s161, 1
      %p165 = scmp.eq.s32.totalorder %s29, 1
      %p166 = scmp.ne.s32.totalorder %s161, %s163
      %p167 = scmp.eq.s32.totalorder %s29, 0
      %p168 = por %p166, %p167
      %p169 = scmp.ne.s32.totalorder %s161, %s163
      %p170 = scmp.eq.s32.totalorder %s34, 1
      %p171 = por %p169, %p170
      %p172 = scmp.ne.s32.totalorder %s163, %s164
      %p173 = scmp.eq.s32.totalorder %s34, 0
      %p174 = por %p172, %p173
      %p175 = scmp.ne.s32.totalorder %s163, %s164
      %p176 = scmp.eq.s32.totalorder %s35, 1
      %p177 = por %p175, %p176
      %p179 = scmp.ne.s32.totalorder %s164, %s178
      %p180 = scmp.eq.s32.totalorder %s35, 0
      %p181 = por %p179, %p180
      %s183 = sadd.s32 %s182, 1
      %p186 = scmp.eq.s32.totalorder %s29, 1
      %p187 = scmp.ne.s32.totalorder %s182, %s184
      %p188 = scmp.eq.s32.totalorder %s29, 0
      %p189 = por %p187, %p188
      %p190 = scmp.ne.s32.totalorder %s182, %s184
      %p191 = scmp.eq.s32.totalorder %s34, 1
      %p192 = por %p190, %p191
      %p193 = scmp.ne.s32.totalorder %s184, %s185
      %p194 = scmp.eq.s32.totalorder %s34, 0
      %p195 = por %p193, %p194
      %p196 = scmp.ne.s32.totalorder %s184, %s185
      %p197 = scmp.eq.s32.totalorder %s35, 1
      %p198 = por %p196, %p197
      %p200 = scmp.ne.s32.totalorder %s185, %s199
      %p201 = scmp.eq.s32.totalorder %s35, 0
      %p202 = por %p200, %p201
      %s204 = sadd.s32 %s203, 1
      %p207 = scmp.eq.s32.totalorder %s29, 1
      %p208 = scmp.ne.s32.totalorder %s203, %s205
      %p209 = scmp.eq.s32.totalorder %s29, 0
      %p210 = por %p208, %p209
      %p211 = scmp.ne.s32.totalorder %s203, %s205
      %p212 = scmp.eq.s32.totalorder %s34, 1
      %p213 = por %p211, %p212
      %p214 = scmp.ne.s32.totalorder %s205, %s206
      %p215 = scmp.eq.s32.totalorder %s34, 0
      %p216 = por %p214, %p215
      %p217 = scmp.ne.s32.totalorder %s205, %s206
      %p218 = scmp.eq.s32.totalorder %s35, 1
      %p219 = por %p217, %p218
      %p221 = scmp.ne.s32.totalorder %s206, %s220
      %p222 = scmp.eq.s32.totalorder %s35, 0
      %p223 = por %p221, %p222
      %s225 = sadd.s32 %s224, 1
      %p228 = scmp.eq.s32.totalorder %s29, 1
      %p229 = scmp.ne.s32.totalorder %s224, %s226
      %p230 = scmp.eq.s32.totalorder %s29, 0
      %p231 = por %p229, %p230
      %p232 = scmp.ne.s32.totalorder %s224, %s226
      %p233 = scmp.eq.s32.totalorder %s34, 1
      %p234 = por %p232, %p233
      %p235 = scmp.ne.s32.totalorder %s226, %s227
      %p236 = scmp.eq.s32.totalorder %s34, 0
      %p237 = por %p235, %p236
      %p238 = scmp.ne.s32.totalorder %s226, %s227
      %p239 = scmp.eq.s32.totalorder %s35, 1
      %p240 = por %p238, %p239
      %p242 = scmp.ne.s32.totalorder %s227, %s241
      %p243 = scmp.eq.s32.totalorder %s35, 0
      %p244 = por %p242, %p243
      %s246 = sadd.s32 %s245, 1
      %p249 = scmp.eq.s32.totalorder %s29, 1
      %p250 = scmp.ne.s32.totalorder %s245, %s247
      %p251 = scmp.eq.s32.totalorder %s29, 0
      %p252 = por %p250, %p251
      %p253 = scmp.ne.s32.totalorder %s245, %s247
      %p254 = scmp.eq.s32.totalorder %s34, 1
      %p255 = por %p253, %p254
      %p256 = scmp.ne.s32.totalorder %s247, %s248
      %p257 = scmp.eq.s32.totalorder %s34, 0
      %p258 = por %p256, %p257
      %p259 = scmp.ne.s32.totalorder %s247, %s248
      %p260 = scmp.eq.s32.totalorder %s35, 1
      %p261 = por %p259, %p260
      %p263 = scmp.ne.s32.totalorder %s248, %s262
      %p264 = scmp.eq.s32.totalorder %s35, 0
      %p265 = por %p263, %p264
      %s266 = ssub.s32 %s37, %s44
      %s267 = ssub.s32 %s36, %s48
      %s268 = sor.u32 %s266, %s267
      %p269 = scmp.eq.s32.totalorder %s268, 0
      %s271 = sadd.s32 %s270, 1
      %s272 = scalar_select %p269, %s270, %s271
      %p275 = pneg %p269
      %p276 = scmp.eq.s32.totalorder %s29, 1
      %p277 = por %p275, %p276
      %p278 = scmp.ne.s32.totalorder %s270, %s273
      %p279 = scmp.eq.s32.totalorder %s29, 0
      %p280 = por %p278, %p279
      %p281 = scmp.ne.s32.totalorder %s270, %s273
      %p282 = scmp.eq.s32.totalorder %s34, 1
      %p283 = por %p281, %p282
      %p284 = scmp.ne.s32.totalorder %s273, %s274
      %p285 = scmp.eq.s32.totalorder %s34, 0
      %p286 = por %p284, %p285
      %p287 = scmp.ne.s32.totalorder %s273, %s274
      %p288 = scmp.eq.s32.totalorder %s35, 1
      %p289 = por %p287, %p288
      %p291 = scmp.ne.s32.totalorder %s274, %s290
      %p292 = scmp.eq.s32.totalorder %s35, 0
      %p293 = por %p291, %p292
      %s294 = ssub.s32 %s37, %s44
      %s295 = ssub.s32 %s36, %s48
      %s296 = sor.u32 %s294, %s295
      %p297 = scmp.eq.s32.totalorder %s296, 0
      %s299 = sadd.s32 %s298, 1
      %s300 = scalar_select %p297, %s298, %s299
      %p303 = pneg %p297
      %p304 = scmp.eq.s32.totalorder %s29, 1
      %p305 = por %p303, %p304
      %p306 = scmp.ne.s32.totalorder %s298, %s301
      %p307 = scmp.eq.s32.totalorder %s29, 0
      %p308 = por %p306, %p307
      %p309 = scmp.ne.s32.totalorder %s298, %s301
      %p310 = scmp.eq.s32.totalorder %s34, 1
      %p311 = por %p309, %p310
      %p312 = scmp.ne.s32.totalorder %s301, %s302
      %p313 = scmp.eq.s32.totalorder %s34, 0
      %p314 = por %p312, %p313
      %p315 = scmp.ne.s32.totalorder %s301, %s302
      %p316 = scmp.eq.s32.totalorder %s35, 1
      %p317 = por %p315, %p316
      %p319 = scmp.ne.s32.totalorder %s302, %s318
      %p320 = scmp.eq.s32.totalorder %s35, 0
      %p321 = por %p319, %p320
      %p322 = scmp.le.s32.totalorder 1, %s29
      %p323 = scmp.lt.s32.totalorder %s29, 3
      %p324 = pnand %p322, %p323
      %p325 = pneg %p324
      // Predicated region
      $region9: #{tpu_custom_call.1} parent=5 // pred_check
        _
      $region10: #{tpu_custom_call.1} parent=5 // pred_check_branch
        %327 = sbr.rel (%p324) target = $region12
      $region11: #{tpu_custom_call.1} parent=5 // pred_region
        %s328 = ssub.s32 %s29, 1
        // Predicated region
        $region13: #{tpu_custom_call.1} parent=11 // pred_check
          %p329 = pneg %p90
        $region14: #{tpu_custom_call.1} parent=11 // pred_check_branch
          %331 = sbr.rel (%p329) target = $region16
        $region15: #{tpu_custom_call.1} parent=11 // pred_region
          %333 = vsyncadd [#allocation9], 0
          %s334 = sshll.u32 %s1, 4
          %s335 = int_to_ptr.hbm [resolvable:$true] %s334
          %s336 = sshll.u32 [#allocation8], 4
          %s337 = int_to_ptr.vmem [resolvable:$true] %s336
          %342 = dma.hbm_to_vmem [thread:$0]  %s335, 1024, %s337, [#allocation9], 64, 64, 4
        $region16: #{tpu_custom_call.1} parent=11 // pred_fallthru
          _
        // Predicated region
        $region17: #{tpu_custom_call.1} parent=11 // pred_check
          %p343 = pneg %p111
        $region18: #{tpu_custom_call.1} parent=11 // pred_check_branch
          %345 = sbr.rel (%p343) target = $region20
        $region19: #{tpu_custom_call.1} parent=11 // pred_region
          _
        $region20: #{tpu_custom_call.1} parent=11 // pred_fallthru
          _
        // Predicated region
        $region21: #{tpu_custom_call.1} parent=11 // pred_check
          %p346 = pneg %p132
        $region22: #{tpu_custom_call.1} parent=11 // pred_check_branch
          %348 = sbr.rel (%p346) target = $region24
        $region23: #{tpu_custom_call.1} parent=11 // pred_region
          _
        $region24: #{tpu_custom_call.1} parent=11 // pred_fallthru
          _
        // Predicated region
        $region25: #{tpu_custom_call.1} parent=11 // pred_check
          %p349 = pneg %p153
        $region26: #{tpu_custom_call.1} parent=11 // pred_check_branch
          %351 = sbr.rel (%p349) target = $region28
        $region27: #{tpu_custom_call.1} parent=11 // pred_region
          %353 = vsyncadd [#allocation9], 0
          %s354 = sshll.u32 %s4, 4
          %s355 = int_to_ptr.hbm [resolvable:$true] %s354
          %s356 = sshll.u32 [#allocation10], 4
          %s357 = int_to_ptr.vmem [resolvable:$true] %s356
          %362 = dma.hbm_to_vmem [thread:$0]  %s355, 1024, %s357, [#allocation9], 64, 64, 4
        $region28: #{tpu_custom_call.1} parent=11 // pred_fallthru
          _
        // Predicated region
        $region29: #{tpu_custom_call.1} parent=11 // pred_check
          %p363 = pneg %p174
        $region30: #{tpu_custom_call.1} parent=11 // pred_check_branch
          %365 = sbr.rel (%p363) target = $region32
        $region31: #{tpu_custom_call.1} parent=11 // pred_region
          _
        $region32: #{tpu_custom_call.1} parent=11 // pred_fallthru
          _
        // Predicated region
        $region33: #{tpu_custom_call.1} parent=11 // pred_check
          %p366 = pneg %p195
        $region34: #{tpu_custom_call.1} parent=11 // pred_check_branch
          %368 = sbr.rel (%p366) target = $region36
        $region35: #{tpu_custom_call.1} parent=11 // pred_region
          _
        $region36: #{tpu_custom_call.1} parent=11 // pred_fallthru
          _
        // Predicated region
        $region37: #{tpu_custom_call.1} parent=11 // pred_check
          %p369 = pneg %p216
        $region38: #{tpu_custom_call.1} parent=11 // pred_check_branch
          %371 = sbr.rel (%p369) target = $region40
        $region39: #{tpu_custom_call.1} parent=11 // pred_region
          %373 = vsyncadd [#allocation12], 0
          %s374 = sshll.u32 %s7, 4
          %s375 = int_to_ptr.hbm [resolvable:$true] %s374
          %s376 = sshll.u32 [#allocation11], 4
          %s377 = int_to_ptr.vmem [resolvable:$true] %s376
          %382 = dma.hbm_to_vmem [thread:$0]  %s375, 1024, %s377, [#allocation12], 64, 64, 4
        $region40: #{tpu_custom_call.1} parent=11 // pred_fallthru
          _
        // Predicated region
        $region41: #{tpu_custom_call.1} parent=11 // pred_check
          %p383 = pneg %p237
        $region42: #{tpu_custom_call.1} parent=11 // pred_check_branch
          %385 = sbr.rel (%p383) target = $region44
        $region43: #{tpu_custom_call.1} parent=11 // pred_region
          _
        $region44: #{tpu_custom_call.1} parent=11 // pred_fallthru
          _
        // Predicated region
        $region45: #{tpu_custom_call.1} parent=11 // pred_check
          %p386 = pneg %p258
        $region46: #{tpu_custom_call.1} parent=11 // pred_check_branch
          %388 = sbr.rel (%p386) target = $region48
        $region47: #{tpu_custom_call.1} parent=11 // pred_region
          _
        $region48: #{tpu_custom_call.1} parent=11 // pred_fallthru
          _
      $region12: #{tpu_custom_call.1} parent=5 // pred_fallthru
        _
      %p389 = scmp.lt.s32.totalorder %s29, 2
      // Predicated region
      $region49: #{tpu_custom_call.1} parent=5 // pred_check
        %p390 = pneg %p389
      $region50: #{tpu_custom_call.1} parent=5 // pred_check_branch
        %392 = sbr.rel (%p390) target = $region52
      $region51: #{tpu_custom_call.1} parent=5 // pred_region
        // Predicated region
        $region53: #{tpu_custom_call.1} parent=51 // pred_check
          %p393 = pneg %p63
        $region54: #{tpu_custom_call.1} parent=51 // pred_check_branch
          %395 = sbr.rel (%p393) target = $region56
        $region55: #{tpu_custom_call.1} parent=51 // pred_region
          %s396 = sand.u32 %s53, 1
          %s397 = scalar_lea.sflag [#allocation6], %s396
          %s398 = sand.u32 %s53, 1
          %s399 = smul.addr %s398, 32
          %s400 = scalar_lea.vmem [#allocation5], %s399
          %s401 = smul.u32 4, %s37
          %s402 = smul.u32 2, %s36
          %404 = vsyncadd %s397, 0
          %s405 = smul.addr %s401, 2
          %s406 = sadd.s32 %s402, %s405
          %s407 = smul.addr %s406, 4
          %s408 = scalar_lea.hbm %s0, %s407
          %s409 = sshll.u32 %s408, 4
          %s410 = int_to_ptr.hbm [resolvable:$true] %s409
          %s411 = sshll.u32 %s400, 4
          %s412 = int_to_ptr.vmem [resolvable:$true] %s411
          %417 = dma.hbm_to_vmem [thread:$0]  %s410, 512, %s412, %s397, 64, 64, 4
        $region56: #{tpu_custom_call.1} parent=51 // pred_fallthru
          _
      $region52: #{tpu_custom_call.1} parent=5 // pred_fallthru
        _
      %p418 = scmp.le.s32.totalorder 1, %s29
      %p419 = scmp.lt.s32.totalorder %s29, 3
      %p420 = pnand %p418, %p419
      %p421 = pneg %p420
      // Predicated region
      $region57: #{tpu_custom_call.1} parent=5 // pred_check
        _
      $region58: #{tpu_custom_call.1} parent=5 // pred_check_branch
        %423 = sbr.rel (%p420) target = $region60
      $region59: #{tpu_custom_call.1} parent=5 // pred_region
        %s424 = ssub.s32 %s29, 1
        %s425 = sand.u32 %s56, 1
        %s426 = scalar_lea.sflag [#allocation6], %s425
        %s427 = sand.u32 %s56, 1
        %s428 = smul.addr %s427, 32
        %s429 = scalar_lea.vmem [#allocation5], %s428
        // Predicated region
        $region61: #{tpu_custom_call.1} parent=59 // pred_check
          %p430 = pneg %p69
        $region62: #{tpu_custom_call.1} parent=59 // pred_check_branch
          %432 = sbr.rel (%p430) target = $region64
        $region63: #{tpu_custom_call.1} parent=59 // pred_region
          %434 = dma.done %s426, 512
        $region64: #{tpu_custom_call.1} parent=59 // pred_fallthru
          _
        // Predicated region
        $region65: #{tpu_custom_call.1} parent=59 // pred_check
          %p435 = pneg %p90
        $region66: #{tpu_custom_call.1} parent=59 // pred_check_branch
          %437 = sbr.rel (%p435) target = $region68
        $region67: #{tpu_custom_call.1} parent=59 // pred_region
          %439 = dma.done [#allocation9], 1024
        $region68: #{tpu_custom_call.1} parent=59 // pred_fallthru
          _
        // Predicated region
        $region69: #{tpu_custom_call.1} parent=59 // pred_check
          %p440 = pneg %p153
        $region70: #{tpu_custom_call.1} parent=59 // pred_check_branch
          %442 = sbr.rel (%p440) target = $region72
        $region71: #{tpu_custom_call.1} parent=59 // pred_region
          %444 = dma.done [#allocation9], 1024
        $region72: #{tpu_custom_call.1} parent=59 // pred_fallthru
          _
        // Predicated region
        $region73: #{tpu_custom_call.1} parent=59 // pred_check
          %p445 = pneg %p216
        $region74: #{tpu_custom_call.1} parent=59 // pred_check_branch
          %447 = sbr.rel (%p445) target = $region76
        $region75: #{tpu_custom_call.1} parent=59 // pred_region
          %449 = dma.done [#allocation12], 1024
        $region76: #{tpu_custom_call.1} parent=59 // pred_fallthru
          _
        %s450 = sand.u32 %s56, 1
        %s451 = scalar_lea.sflag [#allocation6], %s450
        %s452 = sand.u32 %s56, 1
        %s453 = smul.addr %s452, 32
        %s454 = scalar_lea.vmem [#allocation5], %s453
        %p455 = pneg %p69
        %p456 = pneg %p66
        %p457 = pneg %p90
        %p458 = pneg %p87
        %p459 = pneg %p111
        %p460 = pneg %p108
        %p461 = pneg %p132
        %p462 = pneg %p129
        %p463 = pneg %p153
        %p464 = pneg %p150
        %p465 = pneg %p174
        %p466 = pneg %p171
        %p467 = pneg %p195
        %p468 = pneg %p192
        %p469 = pneg %p216
        %p470 = pneg %p213
        %p471 = pneg %p237
        %p472 = pneg %p234
        %p473 = pneg %p258
        %p474 = pneg %p255
        %p475 = pneg %p286
        %p476 = pneg %p283
        %s477 = sand.u32 %s273, 1
        %s478 = scalar_lea.sflag [#allocation7], %s477
        %s479 = sand.u32 %s273, 1
        %s480 = smul.addr %s479, 64
        %s481 = scalar_lea.vmem [#allocation13], %s480
        %p482 = pneg %p314
        %p483 = pneg %p311
        %s484 = sand.u32 %s301, 1
        %s485 = scalar_lea.sflag [#allocation15], %s484
        %s486 = sand.u32 %s301, 1
        %s487 = smul.addr %s486, 64
        %s488 = scalar_lea.vmem [#allocation14], %s487
        %s489 = smul.u32 4, %s39
        %s490 = smul.u32 2, %s38
        %s491 = smul.u32 4, %s39
        %s492 = smul.u32 2, %s38
        %s493 = smul.u32 4, %s39
        %s494 = smul.u32 2, %s38
        %p495 = scmp.eq.s32.totalorder %s39, 0
        // Predicated region
        $region77: #{tpu_custom_call.1} parent=59 // pred_check
          %p496 = pneg %p495
        $region78: #{tpu_custom_call.1} parent=59 // pred_check_branch
          %498 = sbr.rel (%p496) target = $region80
        $region79: #{tpu_custom_call.1} parent=59 // pred_region
          %499 = vst [vmem:[#allocation4] sm:$0xff] 0.0
          %500 = vst [vmem:[#allocation4 + $0x8] sm:$0xff] 0.0
          %501 = vst [vmem:[#allocation4 + $0x10] sm:$0xff] 0.0
          %502 = vst [vmem:[#allocation4 + $0x18] sm:$0xff] 0.0
          %503 = vst [vmem:[#allocation4 + $0x20] sm:$0xff] 0.0
          %504 = vst [vmem:[#allocation4 + $0x28] sm:$0xff] 0.0
        $region80: #{tpu_custom_call.1} parent=59 // pred_fallthru
          _
        %v505 = vld [vmem:[#allocation8] sm:$0xf]
        %v506 = vld [vmem:[#allocation8 + $0x4] sm:$0xf]
        %v507 = vld [vmem:[#allocation8 + $0x8] sm:$0xf]
        %v508 = vld [vmem:[#allocation8 + $0xc] sm:$0xf]
        %v509 = vld [vmem:[#allocation8 + $0x10] sm:$0xf]
        %v510 = vld [vmem:[#allocation8 + $0x14] sm:$0xf]
        %v511 = vld [vmem:[#allocation8 + $0x18] sm:$0xf]
        %v512 = vld [vmem:[#allocation8 + $0x1c] sm:$0xf]
        %v513 = vld [vmem:[#allocation8 + $0x20] sm:$0xf]
        %v514 = vld [vmem:[#allocation8 + $0x24] sm:$0xf]
        %v515 = vld [vmem:[#allocation8 + $0x28] sm:$0xf]
        %v516 = vld [vmem:[#allocation8 + $0x2c] sm:$0xf]
        %v517 = vld [vmem:[#allocation8 + $0x30] sm:$0xf]
        %v518 = vld [vmem:[#allocation8 + $0x34] sm:$0xf]
        %v519 = vld [vmem:[#allocation8 + $0x38] sm:$0xf]
        %v520 = vld [vmem:[#allocation8 + $0x3c] sm:$0xf]
        %v521 = vld [vmem:[%s2] sm:$0x1]
        %v522 = vld [vmem:[%s3] sm:$0x1]
        %v523 = vsub.f32 0.0, %v522
        %v524 = vmul.f32 %v523, 1.442695
        %v525 = vpow.pop %v524
        %v526 = vadd.f32 %v525, 1.0
        %v527 = vrcp.pop %v526
        %v528 = vmul.f32 %v526, %v527
        %v529 = vsub.f32 1.0, %v528
        %v530 = vmul.f32 %v527, %v529
        %v531 = vadd.f32 %v527, %v530
        %vm532 = vweird.f32 %v526
        %vm533 = vweird.f32 %v527
        %vm534 = vmor %vm532, %vm533
        %v535 = vsel %vm534, %v527, %v531
        %v536 = vand.u32 2147483647, %v526
        %vm537 = vcmp.eq.f32.partialorder %v536, 8.507059e+37
        %v538 = vand.u32 %v526, 2147483648
        %v539 = vor.u32 1.1754944e-38, %v538
        %v540 = vsel %vm537, %v539, %v535
        %v541 = vmul.f32 1.0, %v540
        %v542 = vadd.f32 %v541, 0.1
        %v543 = vrcp.pop %v542
        %v544 = vmul.f32 %v542, %v543
        %v545 = vsub.f32 1.0, %v544
        %v546 = vmul.f32 %v543, %v545
        %v547 = vadd.f32 %v543, %v546
        %vm548 = vweird.f32 %v542
        %vm549 = vweird.f32 %v543
        %vm550 = vmor %vm548, %vm549
        %v551 = vsel %vm550, %v543, %v547
        %v552 = vand.u32 2147483647, %v542
        %vm553 = vcmp.eq.f32.partialorder %v552, 8.507059e+37
        %v554 = vand.u32 %v542, 2147483648
        %v555 = vor.u32 1.1754944e-38, %v554
        %v556 = vsel %vm553, %v555, %v551
        %v557 = vmul.f32 0.5, %v556
        %v558 = vld [vmem:[#allocation10] sm:$0xf]
        %v559 = vld [vmem:[#allocation10 + $0x4] sm:$0xf]
        %v560 = vld [vmem:[#allocation10 + $0x8] sm:$0xf]
        %v561 = vld [vmem:[#allocation10 + $0xc] sm:$0xf]
        %v562 = vld [vmem:[#allocation10 + $0x10] sm:$0xf]
        %v563 = vld [vmem:[#allocation10 + $0x14] sm:$0xf]
        %v564 = vld [vmem:[#allocation10 + $0x18] sm:$0xf]
        %v565 = vld [vmem:[#allocation10 + $0x1c] sm:$0xf]
        %v566 = vld [vmem:[#allocation10 + $0x20] sm:$0xf]
        %v567 = vld [vmem:[#allocation10 + $0x24] sm:$0xf]
        %v568 = vld [vmem:[#allocation10 + $0x28] sm:$0xf]
        %v569 = vld [vmem:[#allocation10 + $0x2c] sm:$0xf]
        %v570 = vld [vmem:[#allocation10 + $0x30] sm:$0xf]
        %v571 = vld [vmem:[#allocation10 + $0x34] sm:$0xf]
        %v572 = vld [vmem:[#allocation10 + $0x38] sm:$0xf]
        %v573 = vld [vmem:[#allocation10 + $0x3c] sm:$0xf]
        %v574 = vld [vmem:[%s5] sm:$0x1]
        %v575 = vld [vmem:[%s6] sm:$0x1]
        %v576 = vsub.f32 0.0, %v575
        %v577 = vmul.f32 %v576, 1.442695
        %v578 = vpow.pop %v577
        %v579 = vadd.f32 %v578, 1.0
        %v580 = vrcp.pop %v579
        %v581 = vmul.f32 %v579, %v580
        %v582 = vsub.f32 1.0, %v581
        %v583 = vmul.f32 %v580, %v582
        %v584 = vadd.f32 %v580, %v583
        %vm585 = vweird.f32 %v579
        %vm586 = vweird.f32 %v580
        %vm587 = vmor %vm585, %vm586
        %v588 = vsel %vm587, %v580, %v584
        %v589 = vand.u32 2147483647, %v579
        %vm590 = vcmp.eq.f32.partialorder %v589, 8.507059e+37
        %v591 = vand.u32 %v579, 2147483648
        %v592 = vor.u32 1.1754944e-38, %v591
        %v593 = vsel %vm590, %v592, %v588
        %v594 = vmul.f32 1.0, %v593
        %v595 = vadd.f32 %v594, 0.1
        %v596 = vrcp.pop %v595
        %v597 = vmul.f32 %v595, %v596
        %v598 = vsub.f32 1.0, %v597
        %v599 = vmul.f32 %v596, %v598
        %v600 = vadd.f32 %v596, %v599
        %vm601 = vweird.f32 %v595
        %vm602 = vweird.f32 %v596
        %vm603 = vmor %vm601, %vm602
        %v604 = vsel %vm603, %v596, %v600
        %v605 = vand.u32 2147483647, %v595
        %vm606 = vcmp.eq.f32.partialorder %v605, 8.507059e+37
        %v607 = vand.u32 %v595, 2147483648
        %v608 = vor.u32 1.1754944e-38, %v607
        %v609 = vsel %vm606, %v608, %v604
        %v610 = vmul.f32 0.5, %v609
        %v611 = vld [vmem:[#allocation11] sm:$0xf]
        %v612 = vld [vmem:[#allocation11 + $0x4] sm:$0xf]
        %v613 = vld [vmem:[#allocation11 + $0x8] sm:$0xf]
        %v614 = vld [vmem:[#allocation11 + $0xc] sm:$0xf]
        %v615 = vld [vmem:[#allocation11 + $0x10] sm:$0xf]
        %v616 = vld [vmem:[#allocation11 + $0x14] sm:$0xf]
        %v617 = vld [vmem:[#allocation11 + $0x18] sm:$0xf]
        %v618 = vld [vmem:[#allocation11 + $0x1c] sm:$0xf]
        %v619 = vld [vmem:[#allocation11 + $0x20] sm:$0xf]
        %v620 = vld [vmem:[#allocation11 + $0x24] sm:$0xf]
        %v621 = vld [vmem:[#allocation11 + $0x28] sm:$0xf]
        %v622 = vld [vmem:[#allocation11 + $0x2c] sm:$0xf]
        %v623 = vld [vmem:[#allocation11 + $0x30] sm:$0xf]
        %v624 = vld [vmem:[#allocation11 + $0x34] sm:$0xf]
        %v625 = vld [vmem:[#allocation11 + $0x38] sm:$0xf]
        %v626 = vld [vmem:[#allocation11 + $0x3c] sm:$0xf]
        %v627 = vld [vmem:[%s8] sm:$0x1]
        %v628 = vld [vmem:[%s9] sm:$0x1]
        %v629 = vsub.f32 0.0, %v628
        %v630 = vmul.f32 %v629, 1.442695
        %v631 = vpow.pop %v630
        %v632 = vadd.f32 %v631, 1.0
        %v633 = vrcp.pop %v632
        %v634 = vmul.f32 %v632, %v633
        %v635 = vsub.f32 1.0, %v634
        %v636 = vmul.f32 %v633, %v635
        %v637 = vadd.f32 %v633, %v636
        %vm638 = vweird.f32 %v632
        %vm639 = vweird.f32 %v633
        %vm640 = vmor %vm638, %vm639
        %v641 = vsel %vm640, %v633, %v637
        %v642 = vand.u32 2147483647, %v632
        %vm643 = vcmp.eq.f32.partialorder %v642, 8.507059e+37
        %v644 = vand.u32 %v632, 2147483648
        %v645 = vor.u32 1.1754944e-38, %v644
        %v646 = vsel %vm643, %v645, %v641
        %v647 = vmul.f32 1.0, %v646
        %v648 = vadd.f32 %v647, 0.1
        %v649 = vrcp.pop %v648
        %v650 = vmul.f32 %v648, %v649
        %v651 = vsub.f32 1.0, %v650
        %v652 = vmul.f32 %v649, %v651
        %v653 = vadd.f32 %v649, %v652
        %vm654 = vweird.f32 %v648
        %vm655 = vweird.f32 %v649
        %vm656 = vmor %vm654, %vm655
        %v657 = vsel %vm656, %v649, %v653
        %v658 = vand.u32 2147483647, %v648
        %vm659 = vcmp.eq.f32.partialorder %v658, 8.507059e+37
        %v660 = vand.u32 %v648, 2147483648
        %v661 = vor.u32 1.1754944e-38, %v660
        %v662 = vsel %vm659, %v661, %v657
        %v663 = vmul.f32 0.5, %v662
        %v664 = vld [vmem:[%s429] sm:$0xf]
        %v665 = vld [vmem:[%s429 + $0x4] sm:$0xf]
        %v666 = vld [vmem:[%s429 + $0x8] sm:$0xf]
        %v667 = vld [vmem:[%s429 + $0xc] sm:$0xf]
        %v668 = vld [vmem:[%s429 + $0x10] sm:$0xf]
        %v669 = vld [vmem:[%s429 + $0x14] sm:$0xf]
        %v670 = vld [vmem:[%s429 + $0x18] sm:$0xf]
        %v671 = vld [vmem:[%s429 + $0x1c] sm:$0xf]
        %v673 = vperm.slane %v521, 0
        %v683 = vunpack.c.l.b16 %v664
        %v684 = vunpack.c.l.b16 %v665
        %v685 = vunpack.c.l.b16 %v666
        %v686 = vunpack.c.l.b16 %v667
        %v687 = vunpack.c.l.b16 %v668
        %v688 = vunpack.c.l.b16 %v669
        %v689 = vunpack.c.l.b16 %v670
        %v690 = vunpack.c.l.b16 %v671
        %v691 = vpack.c.b16 %v684, %v683
        %v692 = vpack.c.b16 %v686, %v685
        %v693 = vpack.c.b16 %v688, %v687
        %v694 = vpack.c.b16 %v690, %v689
        %v715 = vunpack.c.l.b16 %v505
        %v716 = vunpack.c.l.b16 %v506
        %v717 = vunpack.c.l.b16 %v507
        %v718 = vunpack.c.l.b16 %v508
        %v719 = vunpack.c.l.b16 %v509
        %v720 = vunpack.c.l.b16 %v510
        %v721 = vunpack.c.l.b16 %v511
        %v722 = vunpack.c.l.b16 %v512
        %v723 = vunpack.c.l.b16 %v513
        %v724 = vunpack.c.l.b16 %v514
        %v725 = vunpack.c.l.b16 %v515
        %v726 = vunpack.c.l.b16 %v516
        %v727 = vunpack.c.l.b16 %v517
        %v728 = vunpack.c.l.b16 %v518
        %v729 = vunpack.c.l.b16 %v519
        %v730 = vunpack.c.l.b16 %v520
        %v731 = vpack.c.b16 %v716, %v715
        %v732 = vpack.c.b16 %v718, %v717
        %v733 = vpack.c.b16 %v720, %v719
        %v734 = vpack.c.b16 %v722, %v721
        %v735 = vpack.c.b16 %v724, %v723
        %v736 = vpack.c.b16 %v726, %v725
        %v737 = vpack.c.b16 %v728, %v727
        %v738 = vpack.c.b16 %v730, %v729
        %747 = vmatpush.bf16.msra.mxu0 %v738
        %748 = vmatpush.bf16.msra.mxu0 %v737
        %749 = vmatpush.bf16.msra.mxu0 %v736
        %750 = vmatpush.bf16.msra.mxu0 %v735
        %751 = vmatpush.bf16.msra.mxu0 %v734
        %752 = vmatpush.bf16.msra.mxu0 %v733
        %753 = vmatpush.bf16.msra.mxu0 %v732
        %754 = vmatpush.bf16.msra.mxu0 %v731
        %755 = vmatmul.bf16.gmra.mxu0 %v691
        %v756 = vpop.f32.mrf.mxu0
        %v757 = vadd.f32 %v673, %v756
        %v758 = vpop.f32.mrf.mxu0
        %v759 = vadd.f32 %v673, %v758
        %760 = vmatmul.bf16.gmra.mxu0 %v692
        %v761 = vpop.f32.mrf.mxu0
        %v762 = vadd.f32 %v673, %v761
        %v763 = vpop.f32.mrf.mxu0
        %v764 = vadd.f32 %v673, %v763
        %765 = vmatmul.bf16.gmra.mxu0 %v693
        %v766 = vpop.f32.mrf.mxu0
        %v767 = vadd.f32 %v673, %v766
        %v768 = vpop.f32.mrf.mxu0
        %v769 = vadd.f32 %v673, %v768
        %770 = vmatmul.bf16.gmra.mxu0 %v694
        %v771 = vpop.f32.mrf.mxu0
        %v772 = vadd.f32 %v673, %v771
        %v773 = vpop.f32.mrf.mxu0
        %v774 = vadd.f32 %v673, %v773
        %775 = vdwg.mxu0
        %776 = vst [vmem:[#allocation2] sm:$0xff] %v757
        %777 = vst [vmem:[#allocation2 + $0x8] sm:$0xff] %v759
        %778 = vst [vmem:[#allocation2 + $0x10] sm:$0xff] %v762
        %779 = vst [vmem:[#allocation2 + $0x18] sm:$0xff] %v764
        %780 = vst [vmem:[#allocation2 + $0x20] sm:$0xff] %v767
        %781 = vst [vmem:[#allocation2 + $0x28] sm:$0xff] %v769
        %782 = vst [vmem:[#allocation2 + $0x30] sm:$0xff] %v772
        %783 = vst [vmem:[#allocation2 + $0x38] sm:$0xff] %v774
        %v784 = vld [vmem:[#allocation4] sm:$0xff]
        %v785 = vld [vmem:[#allocation4 + $0x8] sm:$0xff]
        %v786 = vld [vmem:[#allocation2] sm:$0xff]
        %v787 = vld [vmem:[#allocation2 + $0x8] sm:$0xff]
        %v788 = vsub.f32 0.0, %v784
        %v789 = vsub.f32 0.0, %v785
        %v790 = vadd.f32 %v788, %v786
        %v791 = vadd.f32 %v789, %v787
        %v793 = vperm.slane %v557, 0
        %v795 = vmul.f32 %v793, %v790
        %v796 = vmul.f32 %v793, %v791
        %v797 = vadd.f32 %v784, %v795
        %v798 = vadd.f32 %v785, %v796
        %vm799 = vcmp.gt.f32.partialorder %v797, 0.25
        %vm800 = vcmp.gt.f32.partialorder %v798, 0.25
        %v801 = vsel %vm799, 1, 0
        %v802 = vsel %vm800, 1, 0
        %v803 = vcvt.s32.f32 %v801
        %v804 = vcvt.s32.f32 %v802
        %v805 = vsub.f32 1.0, %v803
        %v806 = vsub.f32 1.0, %v804
        %v807 = vmul.f32 %v797, %v805
        %v808 = vmul.f32 %v798, %v806
        %v809 = vmul.f32 %v803, 0.0
        %v810 = vmul.f32 %v804, 0.0
        %v811 = vadd.f32 %v807, %v809
        %v812 = vadd.f32 %v808, %v810
        %813 = vst [vmem:[#allocation3] sm:$0xff] %v803
        %814 = vst [vmem:[#allocation3 + $0x8] sm:$0xff] %v804
        %s815 = scalar_lea.vmem [#allocation2], 16
        %v816 = vld [vmem:[%s815] sm:$0xff]
        %v817 = vld [vmem:[%s815 + $0x8] sm:$0xff]
        %v818 = vsub.f32 0.0, %v811
        %v819 = vsub.f32 0.0, %v812
        %v820 = vadd.f32 %v818, %v816
        %v821 = vadd.f32 %v819, %v817
        %v822 = vmul.f32 %v793, %v820
        %v823 = vmul.f32 %v793, %v821
        %v824 = vadd.f32 %v811, %v822
        %v825 = vadd.f32 %v812, %v823
        %vm826 = vcmp.gt.f32.partialorder %v824, 0.25
        %vm827 = vcmp.gt.f32.partialorder %v825, 0.25
        %v828 = vsel %vm826, 1, 0
        %v829 = vsel %vm827, 1, 0
        %v830 = vcvt.s32.f32 %v828
        %v831 = vcvt.s32.f32 %v829
        %v832 = vsub.f32 1.0, %v830
        %v833 = vsub.f32 1.0, %v831
        %v834 = vmul.f32 %v824, %v832
        %v835 = vmul.f32 %v825, %v833
        %v836 = vmul.f32 %v830, 0.0
        %v837 = vmul.f32 %v831, 0.0
        %v838 = vadd.f32 %v834, %v836
        %v839 = vadd.f32 %v835, %v837
        %s840 = scalar_lea.vmem [#allocation3], 16
        %841 = vst [vmem:[%s840] sm:$0xff] %v830
        %842 = vst [vmem:[%s840 + $0x8] sm:$0xff] %v831
        %s843 = scalar_lea.vmem [#allocation2], 32
        %v844 = vld [vmem:[%s843] sm:$0xff]
        %v845 = vld [vmem:[%s843 + $0x8] sm:$0xff]
        %v846 = vsub.f32 0.0, %v838
        %v847 = vsub.f32 0.0, %v839
        %v848 = vadd.f32 %v846, %v844
        %v849 = vadd.f32 %v847, %v845
        %v850 = vmul.f32 %v793, %v848
        %v851 = vmul.f32 %v793, %v849
        %v852 = vadd.f32 %v838, %v850
        %v853 = vadd.f32 %v839, %v851
        %vm854 = vcmp.gt.f32.partialorder %v852, 0.25
        %vm855 = vcmp.gt.f32.partialorder %v853, 0.25
        %v856 = vsel %vm854, 1, 0
        %v857 = vsel %vm855, 1, 0
        %v858 = vcvt.s32.f32 %v856
        %v859 = vcvt.s32.f32 %v857
        %v860 = vsub.f32 1.0, %v858
        %v861 = vsub.f32 1.0, %v859
        %v862 = vmul.f32 %v852, %v860
        %v863 = vmul.f32 %v853, %v861
        %v864 = vmul.f32 %v858, 0.0
        %v865 = vmul.f32 %v859, 0.0
        %v866 = vadd.f32 %v862, %v864
        %v867 = vadd.f32 %v863, %v865
        %s868 = scalar_lea.vmem [#allocation3], 32
        %869 = vst [vmem:[%s868] sm:$0xff] %v858
        %870 = vst [vmem:[%s868 + $0x8] sm:$0xff] %v859
        %s871 = scalar_lea.vmem [#allocation2], 48
        %v872 = vld [vmem:[%s871] sm:$0xff]
        %v873 = vld [vmem:[%s871 + $0x8] sm:$0xff]
        %v874 = vsub.f32 0.0, %v866
        %v875 = vsub.f32 0.0, %v867
        %v876 = vadd.f32 %v874, %v872
        %v877 = vadd.f32 %v875, %v873
        %v878 = vmul.f32 %v793, %v876
        %v879 = vmul.f32 %v793, %v877
        %v880 = vadd.f32 %v866, %v878
        %v881 = vadd.f32 %v867, %v879
        %vm882 = vcmp.gt.f32.partialorder %v880, 0.25
        %vm883 = vcmp.gt.f32.partialorder %v881, 0.25
        %v884 = vsel %vm882, 1, 0
        %v885 = vsel %vm883, 1, 0
        %v886 = vcvt.s32.f32 %v884
        %v887 = vcvt.s32.f32 %v885
        %v888 = vsub.f32 1.0, %v886
        %v889 = vsub.f32 1.0, %v887
        %v890 = vmul.f32 %v880, %v888
        %v891 = vmul.f32 %v881, %v889
        %v892 = vmul.f32 %v886, 0.0
        %v893 = vmul.f32 %v887, 0.0
        %v894 = vadd.f32 %v890, %v892
        %v895 = vadd.f32 %v891, %v893
        %s896 = scalar_lea.vmem [#allocation3], 48
        %897 = vst [vmem:[%s896] sm:$0xff] %v886
        %898 = vst [vmem:[%s896 + $0x8] sm:$0xff] %v887
        %899 = vst [vmem:[#allocation4] sm:$0xff] %v894
        %900 = vst [vmem:[#allocation4 + $0x8] sm:$0xff] %v895
        %v901 = vld [vmem:[#allocation3] sm:$0xff]
        %v902 = vld [vmem:[#allocation3 + $0x8] sm:$0xff]
        %v903 = vld [vmem:[#allocation3 + $0x10] sm:$0xff]
        %v904 = vld [vmem:[#allocation3 + $0x18] sm:$0xff]
        %v905 = vld [vmem:[#allocation3 + $0x20] sm:$0xff]
        %v906 = vld [vmem:[#allocation3 + $0x28] sm:$0xff]
        %v907 = vld [vmem:[#allocation3 + $0x30] sm:$0xff]
        %v908 = vld [vmem:[#allocation3 + $0x38] sm:$0xff]
        %v909 = vpack.c.bf16 %v902, %v901
        %v910 = vpack.c.bf16 %v904, %v903
        %v911 = vpack.c.bf16 %v906, %v905
        %v912 = vpack.c.bf16 %v908, %v907
        %v914 = vperm.slane %v574, 0
        %v932 = vunpack.c.l.b16 %v558
        %v933 = vunpack.c.l.b16 %v559
        %v934 = vunpack.c.l.b16 %v560
        %v935 = vunpack.c.l.b16 %v561
        %v936 = vunpack.c.l.b16 %v562
        %v937 = vunpack.c.l.b16 %v563
        %v938 = vunpack.c.l.b16 %v564
        %v939 = vunpack.c.l.b16 %v565
        %v940 = vunpack.c.l.b16 %v566
        %v941 = vunpack.c.l.b16 %v567
        %v942 = vunpack.c.l.b16 %v568
        %v943 = vunpack.c.l.b16 %v569
        %v944 = vunpack.c.l.b16 %v570
        %v945 = vunpack.c.l.b16 %v571
        %v946 = vunpack.c.l.b16 %v572
        %v947 = vunpack.c.l.b16 %v573
        %v948 = vpack.c.b16 %v933, %v932
        %v949 = vpack.c.b16 %v935, %v934
        %v950 = vpack.c.b16 %v937, %v936
        %v951 = vpack.c.b16 %v939, %v938
        %v952 = vpack.c.b16 %v941, %v940
        %v953 = vpack.c.b16 %v943, %v942
        %v954 = vpack.c.b16 %v945, %v944
        %v955 = vpack.c.b16 %v947, %v946
        %964 = vmatpush.bf16.msra.mxu0 %v955
        %965 = vmatpush.bf16.msra.mxu0 %v954
        %966 = vmatpush.bf16.msra.mxu0 %v953
        %967 = vmatpush.bf16.msra.mxu0 %v952
        %968 = vmatpush.bf16.msra.mxu0 %v951
        %969 = vmatpush.bf16.msra.mxu0 %v950
        %970 = vmatpush.bf16.msra.mxu0 %v949
        %971 = vmatpush.bf16.msra.mxu0 %v948
        %972 = vmatmul.bf16.gmra.mxu0 %v909
        %v973 = vpop.f32.mrf.mxu0
        %v974 = vadd.f32 %v914, %v973
        %v975 = vpop.f32.mrf.mxu0
        %v976 = vadd.f32 %v914, %v975
        %977 = vmatmul.bf16.gmra.mxu0 %v910
        %v978 = vpop.f32.mrf.mxu0
        %v979 = vadd.f32 %v914, %v978
        %v980 = vpop.f32.mrf.mxu0
        %v981 = vadd.f32 %v914, %v980
        %982 = vmatmul.bf16.gmra.mxu0 %v911
        %v983 = vpop.f32.mrf.mxu0
        %v984 = vadd.f32 %v914, %v983
        %v985 = vpop.f32.mrf.mxu0
        %v986 = vadd.f32 %v914, %v985
        %987 = vmatmul.bf16.gmra.mxu0 %v912
        %v988 = vpop.f32.mrf.mxu0
        %v989 = vadd.f32 %v914, %v988
        %v990 = vpop.f32.mrf.mxu0
        %v991 = vadd.f32 %v914, %v990
        %992 = vdwg.mxu0
        %993 = vst [vmem:[#allocation2] sm:$0xff] %v974
        %994 = vst [vmem:[#allocation2 + $0x8] sm:$0xff] %v976
        %995 = vst [vmem:[#allocation2 + $0x10] sm:$0xff] %v979
        %996 = vst [vmem:[#allocation2 + $0x18] sm:$0xff] %v981
        %997 = vst [vmem:[#allocation2 + $0x20] sm:$0xff] %v984
        %998 = vst [vmem:[#allocation2 + $0x28] sm:$0xff] %v986
        %999 = vst [vmem:[#allocation2 + $0x30] sm:$0xff] %v989
        %1000 = vst [vmem:[#allocation2 + $0x38] sm:$0xff] %v991
        %s1001 = scalar_lea.vmem [#allocation4], 16
        %v1002 = vld [vmem:[%s1001] sm:$0xff]
        %v1003 = vld [vmem:[%s1001 + $0x8] sm:$0xff]
        %v1004 = vld [vmem:[#allocation2] sm:$0xff]
        %v1005 = vld [vmem:[#allocation2 + $0x8] sm:$0xff]
        %v1006 = vsub.f32 0.0, %v1002
        %v1007 = vsub.f32 0.0, %v1003
        %v1008 = vadd.f32 %v1006, %v1004
        %v1009 = vadd.f32 %v1007, %v1005
        %v1011 = vperm.slane %v610, 0
        %v1013 = vmul.f32 %v1011, %v1008
        %v1014 = vmul.f32 %v1011, %v1009
        %v1015 = vadd.f32 %v1002, %v1013
        %v1016 = vadd.f32 %v1003, %v1014
        %vm1017 = vcmp.gt.f32.partialorder %v1015, 0.25
        %vm1018 = vcmp.gt.f32.partialorder %v1016, 0.25
        %v1019 = vsel %vm1017, 1, 0
        %v1020 = vsel %vm1018, 1, 0
        %v1021 = vcvt.s32.f32 %v1019
        %v1022 = vcvt.s32.f32 %v1020
        %v1023 = vsub.f32 1.0, %v1021
        %v1024 = vsub.f32 1.0, %v1022
        %v1025 = vmul.f32 %v1015, %v1023
        %v1026 = vmul.f32 %v1016, %v1024
        %v1027 = vmul.f32 %v1021, 0.0
        %v1028 = vmul.f32 %v1022, 0.0
        %v1029 = vadd.f32 %v1025, %v1027
        %v1030 = vadd.f32 %v1026, %v1028
        %1031 = vst [vmem:[#allocation3] sm:$0xff] %v1021
        %1032 = vst [vmem:[#allocation3 + $0x8] sm:$0xff] %v1022
        %v1033 = vld [vmem:[%s815] sm:$0xff]
        %v1034 = vld [vmem:[%s815 + $0x8] sm:$0xff]
        %v1035 = vsub.f32 0.0, %v1029
        %v1036 = vsub.f32 0.0, %v1030
        %v1037 = vadd.f32 %v1035, %v1033
        %v1038 = vadd.f32 %v1036, %v1034
        %v1039 = vmul.f32 %v1011, %v1037
        %v1040 = vmul.f32 %v1011, %v1038
        %v1041 = vadd.f32 %v1029, %v1039
        %v1042 = vadd.f32 %v1030, %v1040
        %vm1043 = vcmp.gt.f32.partialorder %v1041, 0.25
        %vm1044 = vcmp.gt.f32.partialorder %v1042, 0.25
        %v1045 = vsel %vm1043, 1, 0
        %v1046 = vsel %vm1044, 1, 0
        %v1047 = vcvt.s32.f32 %v1045
        %v1048 = vcvt.s32.f32 %v1046
        %v1049 = vsub.f32 1.0, %v1047
        %v1050 = vsub.f32 1.0, %v1048
        %v1051 = vmul.f32 %v1041, %v1049
        %v1052 = vmul.f32 %v1042, %v1050
        %v1053 = vmul.f32 %v1047, 0.0
        %v1054 = vmul.f32 %v1048, 0.0
        %v1055 = vadd.f32 %v1051, %v1053
        %v1056 = vadd.f32 %v1052, %v1054
        %1057 = vst [vmem:[%s840] sm:$0xff] %v1047
        %1058 = vst [vmem:[%s840 + $0x8] sm:$0xff] %v1048
        %v1059 = vld [vmem:[%s843] sm:$0xff]
        %v1060 = vld [vmem:[%s843 + $0x8] sm:$0xff]
        %v1061 = vsub.f32 0.0, %v1055
        %v1062 = vsub.f32 0.0, %v1056
        %v1063 = vadd.f32 %v1061, %v1059
        %v1064 = vadd.f32 %v1062, %v1060
        %v1065 = vmul.f32 %v1011, %v1063
        %v1066 = vmul.f32 %v1011, %v1064
        %v1067 = vadd.f32 %v1055, %v1065
        %v1068 = vadd.f32 %v1056, %v1066
        %vm1069 = vcmp.gt.f32.partialorder %v1067, 0.25
        %vm1070 = vcmp.gt.f32.partialorder %v1068, 0.25
        %v1071 = vsel %vm1069, 1, 0
        %v1072 = vsel %vm1070, 1, 0
        %v1073 = vcvt.s32.f32 %v1071
        %v1074 = vcvt.s32.f32 %v1072
        %v1075 = vsub.f32 1.0, %v1073
        %v1076 = vsub.f32 1.0, %v1074
        %v1077 = vmul.f32 %v1067, %v1075
        %v1078 = vmul.f32 %v1068, %v1076
        %v1079 = vmul.f32 %v1073, 0.0
        %v1080 = vmul.f32 %v1074, 0.0
        %v1081 = vadd.f32 %v1077, %v1079
        %v1082 = vadd.f32 %v1078, %v1080
        %1083 = vst [vmem:[%s868] sm:$0xff] %v1073
        %1084 = vst [vmem:[%s868 + $0x8] sm:$0xff] %v1074
        %v1085 = vld [vmem:[%s871] sm:$0xff]
        %v1086 = vld [vmem:[%s871 + $0x8] sm:$0xff]
        %v1087 = vsub.f32 0.0, %v1081
        %v1088 = vsub.f32 0.0, %v1082
        %v1089 = vadd.f32 %v1087, %v1085
        %v1090 = vadd.f32 %v1088, %v1086
        %v1091 = vmul.f32 %v1011, %v1089
        %v1092 = vmul.f32 %v1011, %v1090
        %v1093 = vadd.f32 %v1081, %v1091
        %v1094 = vadd.f32 %v1082, %v1092
        %vm1095 = vcmp.gt.f32.partialorder %v1093, 0.25
        %vm1096 = vcmp.gt.f32.partialorder %v1094, 0.25
        %v1097 = vsel %vm1095, 1, 0
        %v1098 = vsel %vm1096, 1, 0
        %v1099 = vcvt.s32.f32 %v1097
        %v1100 = vcvt.s32.f32 %v1098
        %v1101 = vsub.f32 1.0, %v1099
        %v1102 = vsub.f32 1.0, %v1100
        %v1103 = vmul.f32 %v1093, %v1101
        %v1104 = vmul.f32 %v1094, %v1102
        %v1105 = vmul.f32 %v1099, 0.0
        %v1106 = vmul.f32 %v1100, 0.0
        %v1107 = vadd.f32 %v1103, %v1105
        %v1108 = vadd.f32 %v1104, %v1106
        %1109 = vst [vmem:[%s896] sm:$0xff] %v1099
        %1110 = vst [vmem:[%s896 + $0x8] sm:$0xff] %v1100
        %1111 = vst [vmem:[%s1001] sm:$0xff] %v1107
        %1112 = vst [vmem:[%s1001 + $0x8] sm:$0xff] %v1108
        %v1113 = vld [vmem:[#allocation3] sm:$0xff]
        %v1114 = vld [vmem:[#allocation3 + $0x8] sm:$0xff]
        %v1115 = vld [vmem:[#allocation3 + $0x10] sm:$0xff]
        %v1116 = vld [vmem:[#allocation3 + $0x18] sm:$0xff]
        %v1117 = vld [vmem:[#allocation3 + $0x20] sm:$0xff]
        %v1118 = vld [vmem:[#allocation3 + $0x28] sm:$0xff]
        %v1119 = vld [vmem:[#allocation3 + $0x30] sm:$0xff]
        %v1120 = vld [vmem:[#allocation3 + $0x38] sm:$0xff]
        %v1121 = vpack.c.bf16 %v1114, %v1113
        %v1122 = vpack.c.bf16 %v1116, %v1115
        %v1123 = vpack.c.bf16 %v1118, %v1117
        %v1124 = vpack.c.bf16 %v1120, %v1119
        %v1126 = vperm.slane %v627, 0
        %v1144 = vunpack.c.l.b16 %v611
        %v1145 = vunpack.c.l.b16 %v612
        %v1146 = vunpack.c.l.b16 %v613
        %v1147 = vunpack.c.l.b16 %v614
        %v1148 = vunpack.c.l.b16 %v615
        %v1149 = vunpack.c.l.b16 %v616
        %v1150 = vunpack.c.l.b16 %v617
        %v1151 = vunpack.c.l.b16 %v618
        %v1152 = vunpack.c.l.b16 %v619
        %v1153 = vunpack.c.l.b16 %v620
        %v1154 = vunpack.c.l.b16 %v621
        %v1155 = vunpack.c.l.b16 %v622
        %v1156 = vunpack.c.l.b16 %v623
        %v1157 = vunpack.c.l.b16 %v624
        %v1158 = vunpack.c.l.b16 %v625
        %v1159 = vunpack.c.l.b16 %v626
        %v1160 = vpack.c.b16 %v1145, %v1144
        %v1161 = vpack.c.b16 %v1147, %v1146
        %v1162 = vpack.c.b16 %v1149, %v1148
        %v1163 = vpack.c.b16 %v1151, %v1150
        %v1164 = vpack.c.b16 %v1153, %v1152
        %v1165 = vpack.c.b16 %v1155, %v1154
        %v1166 = vpack.c.b16 %v1157, %v1156
        %v1167 = vpack.c.b16 %v1159, %v1158
        %1176 = vmatpush.bf16.msra.mxu0 %v1167
        %1177 = vmatpush.bf16.msra.mxu0 %v1166
        %1178 = vmatpush.bf16.msra.mxu0 %v1165
        %1179 = vmatpush.bf16.msra.mxu0 %v1164
        %1180 = vmatpush.bf16.msra.mxu0 %v1163
        %1181 = vmatpush.bf16.msra.mxu0 %v1162
        %1182 = vmatpush.bf16.msra.mxu0 %v1161
        %1183 = vmatpush.bf16.msra.mxu0 %v1160
        %1184 = vmatmul.bf16.gmra.mxu0 %v1121
        %v1185 = vpop.f32.mrf.mxu0
        %v1186 = vadd.f32 %v1126, %v1185
        %v1187 = vpop.f32.mrf.mxu0
        %v1188 = vadd.f32 %v1126, %v1187
        %1189 = vmatmul.bf16.gmra.mxu0 %v1122
        %v1190 = vpop.f32.mrf.mxu0
        %v1191 = vadd.f32 %v1126, %v1190
        %v1192 = vpop.f32.mrf.mxu0
        %v1193 = vadd.f32 %v1126, %v1192
        %1194 = vmatmul.bf16.gmra.mxu0 %v1123
        %v1195 = vpop.f32.mrf.mxu0
        %v1196 = vadd.f32 %v1126, %v1195
        %v1197 = vpop.f32.mrf.mxu0
        %v1198 = vadd.f32 %v1126, %v1197
        %1199 = vmatmul.bf16.gmra.mxu0 %v1124
        %v1200 = vpop.f32.mrf.mxu0
        %v1201 = vadd.f32 %v1126, %v1200
        %v1202 = vpop.f32.mrf.mxu0
        %v1203 = vadd.f32 %v1126, %v1202
        %1204 = vdwg.mxu0
        %1205 = vst [vmem:[#allocation2] sm:$0xff] %v1186
        %1206 = vst [vmem:[#allocation2 + $0x8] sm:$0xff] %v1188
        %1207 = vst [vmem:[#allocation2 + $0x10] sm:$0xff] %v1191
        %1208 = vst [vmem:[#allocation2 + $0x18] sm:$0xff] %v1193
        %1209 = vst [vmem:[#allocation2 + $0x20] sm:$0xff] %v1196
        %1210 = vst [vmem:[#allocation2 + $0x28] sm:$0xff] %v1198
        %1211 = vst [vmem:[#allocation2 + $0x30] sm:$0xff] %v1201
        %1212 = vst [vmem:[#allocation2 + $0x38] sm:$0xff] %v1203
        %s1213 = scalar_lea.vmem [#allocation4], 32
        %v1214 = vld [vmem:[%s1213] sm:$0xff]
        %v1215 = vld [vmem:[%s1213 + $0x8] sm:$0xff]
        %v1216 = vld [vmem:[#allocation2] sm:$0xff]
        %v1217 = vld [vmem:[#allocation2 + $0x8] sm:$0xff]
        %v1218 = vsub.f32 0.0, %v1214
        %v1219 = vsub.f32 0.0, %v1215
        %v1220 = vadd.f32 %v1218, %v1216
        %v1221 = vadd.f32 %v1219, %v1217
        %v1223 = vperm.slane %v663, 0
        %v1225 = vmul.f32 %v1223, %v1220
        %v1226 = vmul.f32 %v1223, %v1221
        %v1227 = vadd.f32 %v1214, %v1225
        %v1228 = vadd.f32 %v1215, %v1226
        %vm1229 = vcmp.gt.f32.partialorder %v1227, 0.25
        %vm1230 = vcmp.gt.f32.partialorder %v1228, 0.25
        %v1231 = vsel %vm1229, 1, 0
        %v1232 = vsel %vm1230, 1, 0
        %v1233 = vcvt.s32.f32 %v1231
        %v1234 = vcvt.s32.f32 %v1232
        %v1235 = vsub.f32 1.0, %v1233
        %v1236 = vsub.f32 1.0, %v1234
        %v1237 = vmul.f32 %v1227, %v1235
        %v1238 = vmul.f32 %v1228, %v1236
        %v1239 = vmul.f32 %v1233, 0.0
        %v1240 = vmul.f32 %v1234, 0.0
        %v1241 = vadd.f32 %v1237, %v1239
        %v1242 = vadd.f32 %v1238, %v1240
        %1243 = vst [vmem:[%s481] sm:$0xff] %v1233
        %1244 = vst [vmem:[%s481 + $0x8] sm:$0xff] %v1234
        %1245 = vst [vmem:[%s488] sm:$0xff] %v1241
        %1246 = vst [vmem:[%s488 + $0x8] sm:$0xff] %v1242
        %v1247 = vld [vmem:[%s815] sm:$0xff]
        %v1248 = vld [vmem:[%s815 + $0x8] sm:$0xff]
        %v1249 = vsub.f32 0.0, %v1241
        %v1250 = vsub.f32 0.0, %v1242
        %v1251 = vadd.f32 %v1249, %v1247
        %v1252 = vadd.f32 %v1250, %v1248
        %v1253 = vmul.f32 %v1223, %v1251
        %v1254 = vmul.f32 %v1223, %v1252
        %v1255 = vadd.f32 %v1241, %v1253
        %v1256 = vadd.f32 %v1242, %v1254
        %vm1257 = vcmp.gt.f32.partialorder %v1255, 0.25
        %vm1258 = vcmp.gt.f32.partialorder %v1256, 0.25
        %v1259 = vsel %vm1257, 1, 0
        %v1260 = vsel %vm1258, 1, 0
        %v1261 = vcvt.s32.f32 %v1259
        %v1262 = vcvt.s32.f32 %v1260
        %v1263 = vsub.f32 1.0, %v1261
        %v1264 = vsub.f32 1.0, %v1262
        %v1265 = vmul.f32 %v1255, %v1263
        %v1266 = vmul.f32 %v1256, %v1264
        %v1267 = vmul.f32 %v1261, 0.0
        %v1268 = vmul.f32 %v1262, 0.0
        %v1269 = vadd.f32 %v1265, %v1267
        %v1270 = vadd.f32 %v1266, %v1268
        %s1271 = scalar_lea.vmem %s481, 16 [#allocation13]
        %1272 = vst [vmem:[%s1271] sm:$0xff] %v1261
        %1273 = vst [vmem:[%s1271 + $0x8] sm:$0xff] %v1262
        %s1274 = scalar_lea.vmem %s488, 16 [#allocation14]
        %1275 = vst [vmem:[%s1274] sm:$0xff] %v1269
        %1276 = vst [vmem:[%s1274 + $0x8] sm:$0xff] %v1270
        %v1277 = vld [vmem:[%s843] sm:$0xff]
        %v1278 = vld [vmem:[%s843 + $0x8] sm:$0xff]
        %v1279 = vsub.f32 0.0, %v1269
        %v1280 = vsub.f32 0.0, %v1270
        %v1281 = vadd.f32 %v1279, %v1277
        %v1282 = vadd.f32 %v1280, %v1278
        %v1283 = vmul.f32 %v1223, %v1281
        %v1284 = vmul.f32 %v1223, %v1282
        %v1285 = vadd.f32 %v1269, %v1283
        %v1286 = vadd.f32 %v1270, %v1284
        %vm1287 = vcmp.gt.f32.partialorder %v1285, 0.25
        %vm1288 = vcmp.gt.f32.partialorder %v1286, 0.25
        %v1289 = vsel %vm1287, 1, 0
        %v1290 = vsel %vm1288, 1, 0
        %v1291 = vcvt.s32.f32 %v1289
        %v1292 = vcvt.s32.f32 %v1290
        %v1293 = vsub.f32 1.0, %v1291
        %v1294 = vsub.f32 1.0, %v1292
        %v1295 = vmul.f32 %v1285, %v1293
        %v1296 = vmul.f32 %v1286, %v1294
        %v1297 = vmul.f32 %v1291, 0.0
        %v1298 = vmul.f32 %v1292, 0.0
        %v1299 = vadd.f32 %v1295, %v1297
        %v1300 = vadd.f32 %v1296, %v1298
        %s1301 = scalar_lea.vmem %s481, 32 [#allocation13]
        %1302 = vst [vmem:[%s1301] sm:$0xff] %v1291
        %1303 = vst [vmem:[%s1301 + $0x8] sm:$0xff] %v1292
        %s1304 = scalar_lea.vmem %s488, 32 [#allocation14]
        %1305 = vst [vmem:[%s1304] sm:$0xff] %v1299
        %1306 = vst [vmem:[%s1304 + $0x8] sm:$0xff] %v1300
        %v1307 = vld [vmem:[%s871] sm:$0xff]
        %v1308 = vld [vmem:[%s871 + $0x8] sm:$0xff]
        %v1309 = vsub.f32 0.0, %v1299
        %v1310 = vsub.f32 0.0, %v1300
        %v1311 = vadd.f32 %v1309, %v1307
        %v1312 = vadd.f32 %v1310, %v1308
        %v1313 = vmul.f32 %v1223, %v1311
        %v1314 = vmul.f32 %v1223, %v1312
        %v1315 = vadd.f32 %v1299, %v1313
        %v1316 = vadd.f32 %v1300, %v1314
        %vm1317 = vcmp.gt.f32.partialorder %v1315, 0.25
        %vm1318 = vcmp.gt.f32.partialorder %v1316, 0.25
        %v1319 = vsel %vm1317, 1, 0
        %v1320 = vsel %vm1318, 1, 0
        %v1321 = vcvt.s32.f32 %v1319
        %v1322 = vcvt.s32.f32 %v1320
        %v1323 = vsub.f32 1.0, %v1321
        %v1324 = vsub.f32 1.0, %v1322
        %v1325 = vmul.f32 %v1315, %v1323
        %v1326 = vmul.f32 %v1316, %v1324
        %v1327 = vmul.f32 %v1321, 0.0
        %v1328 = vmul.f32 %v1322, 0.0
        %v1329 = vadd.f32 %v1325, %v1327
        %v1330 = vadd.f32 %v1326, %v1328
        %s1331 = scalar_lea.vmem %s481, 48 [#allocation13]
        %1332 = vst [vmem:[%s1331] sm:$0xff] %v1321
        %1333 = vst [vmem:[%s1331 + $0x8] sm:$0xff] %v1322
        %s1334 = scalar_lea.vmem %s488, 48 [#allocation14]
        %1335 = vst [vmem:[%s1334] sm:$0xff] %v1329
        %1336 = vst [vmem:[%s1334 + $0x8] sm:$0xff] %v1330
        %1337 = vst [vmem:[%s1213] sm:$0xff] %v1329
        %1338 = vst [vmem:[%s1213 + $0x8] sm:$0xff] %v1330
        %s1339 = sand.u32 %s273, 1
        %s1340 = scalar_lea.sflag [#allocation7], %s1339
        %s1341 = sand.u32 %s273, 1
        %s1342 = smul.addr %s1341, 64
        %s1343 = scalar_lea.vmem [#allocation13], %s1342
        %s1344 = sand.u32 %s301, 1
        %s1345 = scalar_lea.sflag [#allocation15], %s1344
        %s1346 = sand.u32 %s301, 1
        %s1347 = smul.addr %s1346, 64
        %s1348 = scalar_lea.vmem [#allocation14], %s1347
        // Predicated region
        $region81: #{tpu_custom_call.1} parent=59 // pred_check
          %p1349 = pneg %p283
        $region82: #{tpu_custom_call.1} parent=59 // pred_check_branch
          %1351 = sbr.rel (%p1349) target = $region84
        $region83: #{tpu_custom_call.1} parent=59 // pred_region
          %s1352 = smul.u32 4, %s39
          %s1353 = smul.u32 2, %s38
          %1355 = vsyncadd %s1340, 0
          %s1356 = smul.addr %s1352, 2
          %s1357 = sadd.s32 %s1353, %s1356
          %s1358 = smul.addr %s1357, 8
          %s1359 = scalar_lea.hbm %s10, %s1358
          %s1360 = sshll.u32 %s1343, 4
          %s1361 = int_to_ptr.vmem [resolvable:$true] %s1360
          %s1362 = sshll.u32 %s1359, 4
          %s1363 = int_to_ptr.hbm [resolvable:$true] %s1362
          %1368 = dma.vmem_to_hbm [thread:$0]  %s1361, 1024, %s1363, %s1340, 128, 128, 8
        $region84: #{tpu_custom_call.1} parent=59 // pred_fallthru
          _
        // Predicated region
        $region85: #{tpu_custom_call.1} parent=59 // pred_check
          %p1369 = pneg %p311
        $region86: #{tpu_custom_call.1} parent=59 // pred_check_branch
          %1371 = sbr.rel (%p1369) target = $region88
        $region87: #{tpu_custom_call.1} parent=59 // pred_region
          %s1372 = smul.u32 4, %s39
          %s1373 = smul.u32 2, %s38
          %1375 = vsyncadd %s1345, 0
          %s1376 = smul.addr %s1372, 2
          %s1377 = sadd.s32 %s1373, %s1376
          %s1378 = smul.addr %s1377, 8
          %s1379 = scalar_lea.hbm %s11, %s1378
          %s1380 = sshll.u32 %s1348, 4
          %s1381 = int_to_ptr.vmem [resolvable:$true] %s1380
          %s1382 = sshll.u32 %s1379, 4
          %s1383 = int_to_ptr.hbm [resolvable:$true] %s1382
          %1388 = dma.vmem_to_hbm [thread:$0]  %s1381, 1024, %s1383, %s1345, 128, 128, 8
        $region88: #{tpu_custom_call.1} parent=59 // pred_fallthru
          _
      $region60: #{tpu_custom_call.1} parent=5 // pred_fallthru
        _
      %p1389 = scmp.le.s32.totalorder 2, %s29
      // Predicated region
      $region89: #{tpu_custom_call.1} parent=5 // pred_check
        %p1390 = pneg %p1389
      $region90: #{tpu_custom_call.1} parent=5 // pred_check_branch
        %1392 = sbr.rel (%p1390) target = $region92
      $region91: #{tpu_custom_call.1} parent=5 // pred_region
        %s1393 = ssub.s32 %s29, 2
        // Predicated region
        $region93: #{tpu_custom_call.1} parent=91 // pred_check
          %p1394 = pneg %p289
        $region94: #{tpu_custom_call.1} parent=91 // pred_check_branch
          %1396 = sbr.rel (%p1394) target = $region96
        $region95: #{tpu_custom_call.1} parent=91 // pred_region
          %s1397 = sand.u32 %s274, 1
          %s1398 = scalar_lea.sflag [#allocation7], %s1397
          %s1399 = sand.u32 %s274, 1
          %s1400 = smul.addr %s1399, 64
          %s1401 = scalar_lea.vmem [#allocation13], %s1400
          %1403 = dma.done %s1398, 1024
        $region96: #{tpu_custom_call.1} parent=91 // pred_fallthru
          _
        // Predicated region
        $region97: #{tpu_custom_call.1} parent=91 // pred_check
          %p1404 = pneg %p317
        $region98: #{tpu_custom_call.1} parent=91 // pred_check_branch
          %1406 = sbr.rel (%p1404) target = $region100
        $region99: #{tpu_custom_call.1} parent=91 // pred_region
          %s1407 = sand.u32 %s302, 1
          %s1408 = scalar_lea.sflag [#allocation15], %s1407
          %s1409 = sand.u32 %s302, 1
          %s1410 = smul.addr %s1409, 64
          %s1411 = scalar_lea.vmem [#allocation14], %s1410
          %1413 = dma.done %s1408, 1024
        $region100: #{tpu_custom_call.1} parent=91 // pred_fallthru
          _
      $region92: #{tpu_custom_call.1} parent=5 // pred_fallthru
        _
    $region6: #{tpu_custom_call.1} parent=1 // loop_footer
      %s33 = sadd.s32 1, %s29
    $region7: #{tpu_custom_call.1} parent=1 // loop_footer_branch
      %28 = sbr.rel target = $region3
    $region8: #{tpu_custom_call.1} parent=1 // loop_exit
      _
    %1414 = vsyncpa [#allocation6], 1
    %s1415 = scalar_lea.sflag [#allocation6], 1
    %1416 = vsyncpa %s1415, 1
    %1417 = vsyncpa [#allocation9], 1
    %1418 = vsyncpa [#allocation12], 1
    %1419 = vsyncpa [#allocation7], 1
    %s1420 = scalar_lea.sflag [#allocation7], 1
    %1421 = vsyncpa %s1420, 1
    %1422 = vsyncpa [#allocation15], 1
    %s1423 = scalar_lea.sflag [#allocation15], 1
    %1424 = vsyncpa %s1423, 1

</llo_original>
